<compile_context>
chip_gen: v6e
topology: v6e:2x2x1
jax: 0.10.0
libtpu: 0.0.40
codegen_flags: <defaults>
</compile_context>

<pallas_src>
import functools

import jax
import jax.numpy as jnp
from jax import lax
from jax.experimental import pallas as pl
from jax.experimental.pallas import tpu as pltpu

EPS = 1e-5
_VMEM_LIMIT = 32 * 1024 * 1024      # explicit scoped-VMEM limit, safe on all gens
_FUSE_ACT_BYTES = 1 << 20           # fuse into a single kernel when x2d <= 1 MiB


# ---------------------------------------------------------------------------
# In-kernel helpers (lane-packed layout: row = (n, h), lane = w*C + c).
# ---------------------------------------------------------------------------
def _conv3x3_rows(rows, w_ref, h_img, mm_dtype):
  """3x3 / stride-1 / pad-1 conv of stacked image rows via 3 banded matmuls.

  rows   : (M, W*C) f32, M = (#images)*h_img, images stacked row-major.
  w_ref  : Ref (3, W*C, W*C) banded weights (W-boundary zeros baked in).
  Returns: (M, W*C) f32 (MXU accumulates in f32).
  """
  m, wc = rows.shape
  zero_row = jnp.zeros((1, wc), jnp.float32)
  h_idx = lax.broadcasted_iota(jnp.int32, (m, wc), 0) % h_img
  # Row m-1 / m+1 with zeros at each image's first / last row (H-dim padding).
  up = jnp.where(h_idx == 0, 0.0,
                 jnp.concatenate([zero_row, rows[:m - 1, :]], axis=0))
  dn = jnp.where(h_idx == h_img - 1, 0.0,
                 jnp.concatenate([rows[1:, :], zero_row], axis=0))
  up = up.astype(mm_dtype)
  mid = rows.astype(mm_dtype)
  dn = dn.astype(mm_dtype)
  o = jnp.dot(up, w_ref[0], preferred_element_type=jnp.float32)
  o = o + jnp.dot(mid, w_ref[1], preferred_element_type=jnp.float32)
  o = o + jnp.dot(dn, w_ref[2], preferred_element_type=jnp.float32)
  return o


def _sum_stats(o):
  """(M, W*C) f32 -> (2, W*C): per-lane sum and sum of squares over rows."""
  return jnp.concatenate(
      [jnp.sum(o, axis=0, keepdims=True),
       jnp.sum(o * o, axis=0, keepdims=True)], axis=0)


def _fold_bn_rows(st, gamma_row, beta_row, gmat, count):
  """Fold training-mode BN into per-lane scale/shift, fully in-kernel.

  st        : (2, W*C) f32 per-lane sum / sumsq of the conv output
  gamma_row : (1, W*C) f32 gamma tiled over W
  beta_row  : (1, W*C) f32 beta tiled over W
  gmat      : (W*C, W*C) f32 channel-group matrix (1 where lane%C matches)
  """
  gs = jnp.dot(st, gmat, preferred_element_type=jnp.float32)  # per-channel sums
  inv_n = 1.0 / count
  mean = gs[0:1, :] * inv_n
  var = jnp.maximum(gs[1:2, :] * inv_n - mean * mean, 0.0)    # biased variance
  scale = gamma_row * lax.rsqrt(var + EPS)
  shift = beta_row - mean * scale
  return scale, shift


# ---------------------------------------------------------------------------
# Kernels.
# ---------------------------------------------------------------------------
def _make_fused_kernel(h_img, count, mm_dtype):
  """Whole residual block in one kernel (whole batch resident in VMEM)."""
  def kernel(x_ref, w1_ref, w2_ref, g1_ref, b1_ref, g2_ref, b2_ref, gm_ref,
             out_ref):
    x = x_ref[...]
    gm = gm_ref[...]
    o1 = _conv3x3_rows(x, w1_ref, h_img, mm_dtype)
    s1, t1 = _fold_bn_rows(_sum_stats(o1), g1_ref[...], b1_ref[...], gm, count)
    a1 = jnp.maximum(o1 * s1 + t1, 0.0)
    o2 = _conv3x3_rows(a1, w2_ref, h_img, mm_dtype)
    s2, t2 = _fold_bn_rows(_sum_stats(o2), g2_ref[...], b2_ref[...], gm, count)
    a2 = jnp.maximum(o2 * s2 + t2, 0.0)
    out_ref[...] = jnp.maximum(x + a2, 0.0)
  return kernel


def _make_stage1_kernel(h_img, mm_dtype):
  """conv1 -> accumulate BN1 stats into a VMEM-resident (2, W*C) output."""
  def kernel(x_ref, w1_ref, st_ref):
    @pl.when(pl.program_id(0) == 0)
    def _init():
      st_ref[...] = jnp.zeros_like(st_ref)
    o1 = _conv3x3_rows(x_ref[...], w1_ref, h_img, mm_dtype)
    st_ref[...] = st_ref[...] + _sum_stats(o1)
  return kernel


def _make_stage2_kernel(h_img, mm_dtype):
  """conv1 -> folded BN1 + relu -> conv2 -> accumulate BN2 stats."""
  def kernel(x_ref, w1_ref, w2_ref, s1_ref, t1_ref, st_ref):
    @pl.when(pl.program_id(0) == 0)
    def _init():
      st_ref[...] = jnp.zeros_like(st_ref)
    o1 = _conv3x3_rows(x_ref[...], w1_ref, h_img, mm_dtype)
    a1 = jnp.maximum(o1 * s1_ref[...] + t1_ref[...], 0.0)
    o2 = _conv3x3_rows(a1, w2_ref, h_img, mm_dtype)
    st_ref[...] = st_ref[...] + _sum_stats(o2)
  return kernel


def _make_stage3_kernel(h_img, mm_dtype):
  """Full forward with both folded BNs + residual add + final relu."""
  def kernel(x_ref, w1_ref, w2_ref, s1_ref, t1_ref, s2_ref, t2_ref, out_ref):
    x = x_ref[...]
    o1 = _conv3x3_rows(x, w1_ref, h_img, mm_dtype)
    a1 = jnp.maximum(o1 * s1_ref[...] + t1_ref[...], 0.0)
    o2 = _conv3x3_rows(a1, w2_ref, h_img, mm_dtype)
    a2 = jnp.maximum(o2 * s2_ref[...] + t2_ref[...], 0.0)
    out_ref[...] = jnp.maximum(x + a2, 0.0)
  return kernel


# ---------------------------------------------------------------------------
# Wrapper-side helpers (tiny, run once per forward under jit).
# ---------------------------------------------------------------------------
def _band_weight_stack(w_hwio, width, dtype):
  """(3, 3, C, C) HWIO conv weights -> (3, W*C, W*C) per-row band matrices.

  Band dh: entry[w_in*C + ci, w_out*C + co] =
      W[dh, w_in - w_out + 1, ci, co] if |w_in - w_out| <= 1 else 0
  (the zeros implement the W-boundary padding).
  """
  c = w_hwio.shape[2]
  wc = width * c
  dw = jnp.arange(width)[:, None] - jnp.arange(width)[None, :] + 1   # (w_in, w_out)
  valid = ((dw >= 0) & (dw <= 2)).astype(w_hwio.dtype)
  dw_c = jnp.clip(dw, 0, 2)
  bands = []
  for dh in range(3):
    g = w_hwio[dh][dw_c] * valid[:, :, None, None]        # (W, W, C, C)
    g = jnp.transpose(g, (0, 2, 1, 3)).reshape(wc, wc)    # (w_in*C+ci, w_out*C+co)
    bands.append(g)
  return jnp.stack(bands, axis=0).astype(dtype)           # (3, W*C, W*C)


def _tile_row(v, width):
  """(C,) per-channel vector -> (1, W*C) lane-tiled row (lane = w*C + c)."""
  return jnp.tile(v.astype(jnp.float32), width).reshape(1, -1)


def _fold_bn_host(st, gamma, beta, count, width, c):
  """(2, W*C) global stats -> folded per-lane scale/shift rows (1, W*C)."""
  s = st.reshape(2, width, c).sum(axis=1)                 # (2, C)
  mean = s[0] / count
  var = jnp.maximum(s[1] / count - mean * mean, 0.0)      # biased (training BN)
  scale = gamma * lax.rsqrt(var + EPS)
  shift = beta - mean * scale
  return _tile_row(scale, width), _tile_row(shift, width)


def _pick_batch_tile(n, h, wc):
  """Images per grid step: biggest divisor of n with <=512 rows / <=2 MiB."""
  best = 1
  for cand in range(1, n + 1):
    if n % cand:
      continue
    rows = cand * h
    if rows > 512 or rows * wc * 4 > (2 << 20):
      continue
    if rows % 8 and cand != n:    # keep blocks sublane-aligned unless single tile
      continue
    best = cand
  return best


def _forward_rows(x2d, n, h, w, c, w1_hwio, w2_hwio, g1, b1, g2, b2,
                  matmul_dtype, force_multipass, batch_tile):
  wc = w * c
  m = n * h
  count = n * h * w
  wb1 = _band_weight_stack(w1_hwio, w, matmul_dtype)
  wb2 = _band_weight_stack(w2_hwio, w, matmul_dtype)

  w_spec = pl.BlockSpec((3, wc, wc), lambda i: (0, 0, 0))   # resident weights
  row_spec = pl.BlockSpec((1, wc), lambda i: (0, 0))        # scale / shift rows

  fuse = (not force_multipass) and (m * wc * 4 <= _FUSE_ACT_BYTES)
  if fuse:
    # ---- single fused kernel: whole batch resident in VMEM -----------------
    lane = jnp.arange(wc)
    gmat = (lane[:, None] % c == lane[None, :] % c).astype(jnp.float32)
    full_spec = pl.BlockSpec((m, wc), lambda i: (0, 0))
    out2d = pl.pallas_call(
        _make_fused_kernel(h, count, matmul_dtype),
        grid=(1,),
        in_specs=[full_spec, w_spec, w_spec, row_spec, row_spec, row_spec,
                  row_spec, pl.BlockSpec((wc, wc), lambda i: (0, 0))],
        out_specs=full_spec,
        out_shape=jax.ShapeDtypeStruct((m, wc), jnp.float32),
        compiler_params=pltpu.CompilerParams(
            dimension_semantics=("arbitrary",),
            vmem_limit_bytes=_VMEM_LIMIT),
    )(x2d, wb1, wb2, _tile_row(g1, w), _tile_row(b1, w),
      _tile_row(g2, w), _tile_row(b2, w), gmat)
    return out2d

  # ---- 3-pass fallback (training BN needs global stats between convs) ------
  b = batch_tile if batch_tile is not None else _pick_batch_tile(n, h, wc)
  if n % b:
    raise ValueError(f"batch_tile={b} must divide N={n}")
  tiles = n // b
  rows = b * h
  x_spec = pl.BlockSpec((rows, wc), lambda i: (i, 0))
  st_spec = pl.BlockSpec((2, wc), lambda i: (0, 0))         # VMEM-resident accum
  st_shape = jax.ShapeDtypeStruct((2, wc), jnp.float32)
  cp_arb = pltpu.CompilerParams(dimension_semantics=("arbitrary",),
                                vmem_limit_bytes=_VMEM_LIMIT)
  cp_par = pltpu.CompilerParams(dimension_semantics=("parallel",),
                                vmem_limit_bytes=_VMEM_LIMIT)

  stats1 = pl.pallas_call(
      _make_stage1_kernel(h, matmul_dtype), grid=(tiles,),
      in_specs=[x_spec, w_spec], out_specs=st_spec, out_shape=st_shape,
      compiler_params=cp_arb)(x2d, wb1)
  s1, t1 = _fold_bn_host(stats1, g1, b1, count, w, c)

  stats2 = pl.pallas_call(
      _make_stage2_kernel(h, matmul_dtype), grid=(tiles,),
      in_specs=[x_spec, w_spec, w_spec, row_spec, row_spec],
      out_specs=st_spec, out_shape=st_shape,
      compiler_params=cp_arb)(x2d, wb1, wb2, s1, t1)
  s2, t2 = _fold_bn_host(stats2, g2, b2, count, w, c)

  out2d = pl.pallas_call(
      _make_stage3_kernel(h, matmul_dtype), grid=(tiles,),
      in_specs=[x_spec, w_spec, w_spec, row_spec, row_spec, row_spec, row_spec],
      out_specs=x_spec,
      out_shape=jax.ShapeDtypeStruct((m, wc), jnp.float32),
      compiler_params=cp_par)(x2d, wb1, wb2, s1, t1, s2, t2)
  return out2d


@functools.partial(
    jax.jit, static_argnames=("matmul_dtype", "force_multipass", "batch_tile"))
def residual_block_forward_nhwc(x_nhwc, w1_hwio, w2_hwio, g1, b1, g2, b2, *,
                                matmul_dtype=jnp.bfloat16,
                                force_multipass=False, batch_tile=None):
  """NHWC entry point (preferred: no layout transposes around the kernels)."""
  n, h, w, c = x_nhwc.shape
  x2d = x_nhwc.astype(jnp.float32).reshape(n * h, w * c)
  out2d = _forward_rows(x2d, n, h, w, c, w1_hwio, w2_hwio, g1, b1, g2, b2,
                        matmul_dtype, force_multipass, batch_tile)
  return out2d.reshape(n, h, w, c)


@functools.partial(
    jax.jit, static_argnames=("matmul_dtype", "force_multipass", "batch_tile"))
def residual_block_forward(x_nchw, w1_hwio, w2_hwio, g1, b1, g2, b2, *,
                           matmul_dtype=jnp.bfloat16,
                           force_multipass=False, batch_tile=None):
  """NCHW entry point matching the PyTorch module's layout."""
  n, c, h, w = x_nchw.shape
  x2d = jnp.transpose(x_nchw, (0, 2, 3, 1)).astype(jnp.float32).reshape(
      n * h, w * c)
  out2d = _forward_rows(x2d, n, h, w, c, w1_hwio, w2_hwio, g1, b1, g2, b2,
                        matmul_dtype, force_multipass, batch_tile)
  return jnp.transpose(out2d.reshape(n, h, w, c), (0, 3, 1, 2))


# ---------------------------------------------------------------------------
# Pure-JAX reference (XLA convs) for correctness checking.
# ---------------------------------------------------------------------------
def _reference_forward(x_nchw, w1_hwio, w2_hwio, g1, b1, g2, b2,
                       conv_dtype=jnp.float32):
  """conv_dtype=bfloat16 reproduces the kernel's mixed-precision matmuls
  (bf16 operands, f32 accumulation, f32 BN / elementwise)."""
  def conv(x, w_hwio):
    w_oihw = jnp.transpose(w_hwio, (3, 2, 0, 1)).astype(conv_dtype)
    return lax.conv_general_dilated(
        x.astype(conv_dtype), w_oihw, window_strides=(1, 1),
        padding=((1, 1), (1, 1)),
        dimension_numbers=('NCHW', 'OIHW', 'NCHW'),
        preferred_element_type=jnp.float32,
        precision=lax.Precision.HIGHEST)

  def bn_relu(o, g, b):
    mean = jnp.mean(o, axis=(0, 2, 3), keepdims=True)
    var = jnp.mean((o - mean) ** 2, axis=(0, 2, 3), keepdims=True)
    y = (o - mean) * lax.rsqrt(var + EPS) * g.reshape(1, -1, 1, 1) \
        + b.reshape(1, -1, 1, 1)
    return jnp.maximum(y, 0.0)

  out = bn_relu(conv(x_nchw, w1_hwio), g1, b1)
  out = bn_relu(conv(out, w2_hwio), g2, b2)
  return jnp.maximum(x_nchw + out, 0.0)


if __name__ == "__main__":
  # same_shape=True => in_channel == out_channel; W*C = 128 (lane-dense).
  N, C, H, W = 2, 8, 16, 16

  key = jax.random.PRNGKey(0)
  kx, k1, k2, kg1, kb1, kg2, kb2, kx2 = jax.random.split(key, 8)

  x = jax.random.normal(kx, (N, C, H, W), jnp.float32)
  w1 = 0.1 * jax.random.normal(k1, (3, 3, C, C), jnp.float32)   # HWIO
  w2 = 0.1 * jax.random.normal(k2, (3, 3, C, C), jnp.float32)
  g1 = 1.0 + 0.1 * jax.random.normal(kg1, (C,), jnp.float32)
  b1 = 0.1 * jax.random.normal(kb1, (C,), jnp.float32)
  g2 = 1.0 + 0.1 * jax.random.normal(kg2, (C,), jnp.float32)
  b2 = 0.1 * jax.random.normal(kb2, (C,), jnp.float32)

  ref_f32 = _reference_forward(x, w1, w2, g1, b1, g2, b2)
  ref_bf16 = _reference_forward(x, w1, w2, g1, b1, g2, b2,
                                conv_dtype=jnp.bfloat16)

  # 1) Default path: fused single kernel, bf16 MXU operands / f32 accumulation.
  out = jax.block_until_ready(residual_block_forward(x, w1, w2, g1, b1, g2, b2))
  err_matched = float(jnp.max(jnp.abs(out - ref_bf16)))
  err_vs_f32 = float(jnp.max(jnp.abs(out - ref_f32)))
  assert err_matched < 2e-3, f"vs matched bf16 reference: {err_matched}"
  assert err_vs_f32 < 5e-2, f"vs f32 reference (bf16 rounding bound): {err_vs_f32}"

  # 2) Exact-precision path (f32 MXU operands), same fused kernel.
  out32 = jax.block_until_ready(residual_block_forward(
      x, w1, w2, g1, b1, g2, b2, matmul_dtype=jnp.float32))
  err32 = float(jnp.max(jnp.abs(out32 - ref_f32)))
  assert err32 < 1e-3, f"f32 kernel vs f32 reference: {err32}"

  # 3) Large-batch fallback: batch-tiled 3-pass path with the stats accumulator.
  N2 = 4
  x_big = jax.random.normal(kx2, (N2, C, H, W), jnp.float32)
  ref_big = _reference_forward(x_big, w1, w2, g1, b1, g2, b2,
                               conv_dtype=jnp.bfloat16)
  out_big = jax.block_until_ready(residual_block_forward(
      x_big, w1, w2, g1, b1, g2, b2, force_multipass=True, batch_tile=1))
  err_big = float(jnp.max(jnp.abs(out_big - ref_big)))
  assert err_big < 2e-3, f"multi-pass path vs matched reference: {err_big}"

  print("KERNEL_OK")
</pallas_src>

<mosaic_0001>
module attributes {stable_mosaic.version = 11 : i64} {
  func.func @kernel(%arg0: i32, %arg1: memref<32x128xf32, #tpu.memory_space<vmem>>, %arg2: memref<3x128x128xbf16, #tpu.memory_space<vmem>>, %arg3: memref<3x128x128xbf16, #tpu.memory_space<vmem>>, %arg4: memref<1x128xf32, #tpu.memory_space<vmem>>, %arg5: memref<1x128xf32, #tpu.memory_space<vmem>>, %arg6: memref<1x128xf32, #tpu.memory_space<vmem>>, %arg7: memref<1x128xf32, #tpu.memory_space<vmem>>, %arg8: memref<128x128xf32, #tpu.memory_space<vmem>>, %arg9: memref<32x128xf32, #tpu.memory_space<vmem>>) attributes {dimension_semantics = [#tpu.dimension_semantics<arbitrary>], iteration_bounds = array<i64: 1>, scalar_prefetch = 0 : i64, scratch_operands = 0 : i64, tpu.core_type = #tpu.core_type<tc>, window_params = [{pipeline_mode = #tpu.pipeline_mode<synchronous>, transform_indices = @transform_0, window_bounds = array<i64: 32, 128>}, {pipeline_mode = #tpu.pipeline_mode<synchronous>, transform_indices = @transform_1, window_bounds = array<i64: 3, 128, 128>}, {pipeline_mode = #tpu.pipeline_mode<synchronous>, transform_indices = @transform_2, window_bounds = array<i64: 3, 128, 128>}, {pipeline_mode = #tpu.pipeline_mode<synchronous>, transform_indices = @transform_3, window_bounds = array<i64: 1, 128>}, {pipeline_mode = #tpu.pipeline_mode<synchronous>, transform_indices = @transform_4, window_bounds = array<i64: 1, 128>}, {pipeline_mode = #tpu.pipeline_mode<synchronous>, transform_indices = @transform_5, window_bounds = array<i64: 1, 128>}, {pipeline_mode = #tpu.pipeline_mode<synchronous>, transform_indices = @transform_6, window_bounds = array<i64: 1, 128>}, {pipeline_mode = #tpu.pipeline_mode<synchronous>, transform_indices = @transform_7, window_bounds = array<i64: 128, 128>}, {pipeline_mode = #tpu.pipeline_mode<synchronous>, transform_indices = @transform_8, window_bounds = array<i64: 32, 128>}]} {
    %c0 = arith.constant 0 : index
    %c0_0 = arith.constant 0 : index
    %0 = vector.load %arg1[%c0, %c0_0] : memref<32x128xf32, #tpu.memory_space<vmem>>, vector<32x128xf32>
    %c0_1 = arith.constant 0 : index
    %c0_2 = arith.constant 0 : index
    %1 = vector.load %arg8[%c0_1, %c0_2] : memref<128x128xf32, #tpu.memory_space<vmem>>, vector<128x128xf32>
    %cst = arith.constant 0.000000e+00 : f32
    %2 = vector.broadcast %cst : f32 to vector<1x128xf32>
    %3 = tpu.iota {dimensions = array<i32: 0>} : vector<32x128xi32>
    %c16_i32 = arith.constant 16 : i32
    %c0_i32 = arith.constant 0 : i32
    %4 = arith.cmpi eq, %c16_i32, %c0_i32 : i32
    %c1_i32 = arith.constant 1 : i32
    %5 = arith.select %4, %c1_i32, %c16_i32 : i32
    %6 = vector.broadcast %5 : i32 to vector<32x128xi32>
    %7 = arith.remsi %3, %6 : vector<32x128xi32>
    %c0_i32_3 = arith.constant 0 : i32
    %8 = vector.broadcast %c0_i32_3 : i32 to vector<32x128xi32>
    %9 = arith.cmpi ne, %7, %8 : vector<32x128xi32>
    %c0_i32_4 = arith.constant 0 : i32
    %10 = vector.broadcast %c0_i32_4 : i32 to vector<32x128xi32>
    %11 = arith.cmpi slt, %7, %10 : vector<32x128xi32>
    %c0_i32_5 = arith.constant 0 : i32
    %12 = arith.cmpi slt, %5, %c0_i32_5 : i32
    %13 = vector.broadcast %12 : i1 to vector<32x128xi1>
    %14 = vector.broadcast %13 : vector<32x128xi1> to vector<32x128xi1>
    %15 = arith.xori %11, %14 : vector<32x128xi1>
    %16 = arith.andi %15, %9 : vector<32x128xi1>
    %17 = vector.broadcast %5 : i32 to vector<32x128xi32>
    %18 = arith.addi %7, %17 : vector<32x128xi32>
    %19 = arith.select %16, %18, %7 : vector<32x128xi1>, vector<32x128xi32>
    %c0_i32_6 = arith.constant 0 : i32
    %20 = vector.broadcast %c0_i32_6 : i32 to vector<32x128xi32>
    %21 = arith.cmpi eq, %19, %20 : vector<32x128xi32>
    %22 = vector.extract_strided_slice %0 {offsets = [0, 0], sizes = [31, 128], strides = [1, 1]} : vector<32x128xf32> to vector<31x128xf32>
    %23 = tpu.concatenate %2, %22 in 0 : vector<1x128xf32>, vector<31x128xf32> -> vector<32x128xf32>
    %cst_7 = arith.constant 0.000000e+00 : f32
    %24 = vector.broadcast %cst_7 : f32 to vector<32x128xf32>
    %25 = arith.select %21, %24, %23 : vector<32x128xi1>, vector<32x128xf32>
    %c15_i32 = arith.constant 15 : i32
    %26 = vector.broadcast %c15_i32 : i32 to vector<32x128xi32>
    %27 = arith.cmpi eq, %19, %26 : vector<32x128xi32>
    %28 = vector.extract_strided_slice %0 {offsets = [1, 0], sizes = [31, 128], strides = [1, 1]} : vector<32x128xf32> to vector<31x128xf32>
    %29 = tpu.concatenate %28, %2 in 0 : vector<31x128xf32>, vector<1x128xf32> -> vector<32x128xf32>
    %cst_8 = arith.constant 0.000000e+00 : f32
    %30 = vector.broadcast %cst_8 : f32 to vector<32x128xf32>
    %31 = arith.select %27, %30, %29 : vector<32x128xi1>, vector<32x128xf32>
    %32 = arith.truncf %25 : vector<32x128xf32> to vector<32x128xbf16>
    %33 = arith.truncf %0 : vector<32x128xf32> to vector<32x128xbf16>
    %34 = arith.truncf %31 : vector<32x128xf32> to vector<32x128xbf16>
    %c0_9 = arith.constant 0 : index
    %c0_10 = arith.constant 0 : index
    %c0_11 = arith.constant 0 : index
    %35 = vector.load %arg2[%c0_9, %c0_10, %c0_11] : memref<3x128x128xbf16, #tpu.memory_space<vmem>>, vector<1x128x128xbf16>
    %36 = vector.shape_cast %35 : vector<1x128x128xbf16> to vector<128x128xbf16>
    %cst_12 = arith.constant dense<0.000000e+00> : vector<32x128xf32>
    %37 = tpu.matmul %32, %36, %cst_12 {dimension_numbers = #tpu.dot_dimension_numbers<[1], [0], [0], [1], [0, 0, 1, 1], [], []>} : vector<32x128xbf16>, vector<128x128xbf16>, vector<32x128xf32> -> vector<32x128xf32>
    %c1 = arith.constant 1 : index
    %c0_13 = arith.constant 0 : index
    %c0_14 = arith.constant 0 : index
    %38 = vector.load %arg2[%c1, %c0_13, %c0_14] : memref<3x128x128xbf16, #tpu.memory_space<vmem>>, vector<1x128x128xbf16>
    %39 = vector.shape_cast %38 : vector<1x128x128xbf16> to vector<128x128xbf16>
    %cst_15 = arith.constant dense<0.000000e+00> : vector<32x128xf32>
    %40 = tpu.matmul %33, %39, %cst_15 {dimension_numbers = #tpu.dot_dimension_numbers<[1], [0], [0], [1], [0, 0, 1, 1], [], []>} : vector<32x128xbf16>, vector<128x128xbf16>, vector<32x128xf32> -> vector<32x128xf32>
    %41 = arith.addf %37, %40 : vector<32x128xf32>
    %c2 = arith.constant 2 : index
    %c0_16 = arith.constant 0 : index
    %c0_17 = arith.constant 0 : index
    %42 = vector.load %arg2[%c2, %c0_16, %c0_17] : memref<3x128x128xbf16, #tpu.memory_space<vmem>>, vector<1x128x128xbf16>
    %43 = vector.shape_cast %42 : vector<1x128x128xbf16> to vector<128x128xbf16>
    %cst_18 = arith.constant dense<0.000000e+00> : vector<32x128xf32>
    %44 = tpu.matmul %34, %43, %cst_18 {dimension_numbers = #tpu.dot_dimension_numbers<[1], [0], [0], [1], [0, 0, 1, 1], [], []>} : vector<32x128xbf16>, vector<128x128xbf16>, vector<32x128xf32> -> vector<32x128xf32>
    %45 = arith.addf %41, %44 : vector<32x128xf32>
    %cst_19 = arith.constant dense<0.000000e+00> : vector<128xf32>
    %46 = vector.multi_reduction <add>, %45, %cst_19 [0] : vector<32x128xf32> to vector<128xf32>
    %47 = vector.shape_cast %46 : vector<128xf32> to vector<1x128xf32>
    %48 = arith.mulf %45, %45 : vector<32x128xf32>
    %cst_20 = arith.constant dense<0.000000e+00> : vector<128xf32>
    %49 = vector.multi_reduction <add>, %48, %cst_20 [0] : vector<32x128xf32> to vector<128xf32>
    %50 = vector.shape_cast %49 : vector<128xf32> to vector<1x128xf32>
    %51 = tpu.concatenate %47, %50 in 0 : vector<1x128xf32>, vector<1x128xf32> -> vector<2x128xf32>
    %c0_21 = arith.constant 0 : index
    %c0_22 = arith.constant 0 : index
    %52 = vector.load %arg4[%c0_21, %c0_22] : memref<1x128xf32, #tpu.memory_space<vmem>>, vector<1x128xf32>
    %c0_23 = arith.constant 0 : index
    %c0_24 = arith.constant 0 : index
    %53 = vector.load %arg5[%c0_23, %c0_24] : memref<1x128xf32, #tpu.memory_space<vmem>>, vector<1x128xf32>
    %cst_25 = arith.constant dense<0.000000e+00> : vector<2x128xf32>
    %54 = tpu.matmul %51, %1, %cst_25 {dimension_numbers = #tpu.dot_dimension_numbers<[1], [0], [0], [1], [0, 0, 1, 1], [], []>} : vector<2x128xf32>, vector<128x128xf32>, vector<2x128xf32> -> vector<2x128xf32>
    %55 = vector.extract_strided_slice %54 {offsets = [0, 0], sizes = [1, 128], strides = [1, 1]} : vector<2x128xf32> to vector<1x128xf32>
    %cst_26 = arith.constant 0.001953125 : f32
    %56 = vector.broadcast %cst_26 : f32 to vector<1x128xf32>
    %57 = arith.mulf %55, %56 : vector<1x128xf32>
    %58 = vector.extract_strided_slice %54 {offsets = [1, 0], sizes = [1, 128], strides = [1, 1]} : vector<2x128xf32> to vector<1x128xf32>
    %cst_27 = arith.constant 0.001953125 : f32
    %59 = vector.broadcast %cst_27 : f32 to vector<1x128xf32>
    %60 = arith.mulf %58, %59 : vector<1x128xf32>
    %61 = arith.mulf %57, %57 : vector<1x128xf32>
    %62 = arith.subf %60, %61 : vector<1x128xf32>
    %cst_28 = arith.constant 0.000000e+00 : f32
    %63 = vector.broadcast %cst_28 : f32 to vector<1x128xf32>
    %64 = arith.maximumf %62, %63 : vector<1x128xf32>
    %cst_29 = arith.constant 9.99999974E-6 : f32
    %65 = vector.broadcast %cst_29 : f32 to vector<1x128xf32>
    %66 = arith.addf %64, %65 : vector<1x128xf32>
    %67 = math.rsqrt %66 : vector<1x128xf32>
    %68 = arith.mulf %52, %67 : vector<1x128xf32>
    %69 = arith.mulf %57, %68 : vector<1x128xf32>
    %70 = arith.subf %53, %69 : vector<1x128xf32>
    %71 = vector.broadcast %68 : vector<1x128xf32> to vector<32x128xf32>
    %72 = arith.mulf %45, %71 : vector<32x128xf32>
    %73 = vector.broadcast %70 : vector<1x128xf32> to vector<32x128xf32>
    %74 = arith.addf %72, %73 : vector<32x128xf32>
    %cst_30 = arith.constant 0.000000e+00 : f32
    %75 = vector.broadcast %cst_30 : f32 to vector<32x128xf32>
    %76 = arith.maximumf %74, %75 : vector<32x128xf32>
    %cst_31 = arith.constant 0.000000e+00 : f32
    %77 = vector.broadcast %cst_31 : f32 to vector<1x128xf32>
    %78 = tpu.iota {dimensions = array<i32: 0>} : vector<32x128xi32>
    %c16_i32_32 = arith.constant 16 : i32
    %c0_i32_33 = arith.constant 0 : i32
    %79 = arith.cmpi eq, %c16_i32_32, %c0_i32_33 : i32
    %c1_i32_34 = arith.constant 1 : i32
    %80 = arith.select %79, %c1_i32_34, %c16_i32_32 : i32
    %81 = vector.broadcast %80 : i32 to vector<32x128xi32>
    %82 = arith.remsi %78, %81 : vector<32x128xi32>
    %c0_i32_35 = arith.constant 0 : i32
    %83 = vector.broadcast %c0_i32_35 : i32 to vector<32x128xi32>
    %84 = arith.cmpi ne, %82, %83 : vector<32x128xi32>
    %c0_i32_36 = arith.constant 0 : i32
    %85 = vector.broadcast %c0_i32_36 : i32 to vector<32x128xi32>
    %86 = arith.cmpi slt, %82, %85 : vector<32x128xi32>
    %c0_i32_37 = arith.constant 0 : i32
    %87 = arith.cmpi slt, %80, %c0_i32_37 : i32
    %88 = vector.broadcast %87 : i1 to vector<32x128xi1>
    %89 = vector.broadcast %88 : vector<32x128xi1> to vector<32x128xi1>
    %90 = arith.xori %86, %89 : vector<32x128xi1>
    %91 = arith.andi %90, %84 : vector<32x128xi1>
    %92 = vector.broadcast %80 : i32 to vector<32x128xi32>
    %93 = arith.addi %82, %92 : vector<32x128xi32>
    %94 = arith.select %91, %93, %82 : vector<32x128xi1>, vector<32x128xi32>
    %c0_i32_38 = arith.constant 0 : i32
    %95 = vector.broadcast %c0_i32_38 : i32 to vector<32x128xi32>
    %96 = arith.cmpi eq, %94, %95 : vector<32x128xi32>
    %97 = vector.extract_strided_slice %76 {offsets = [0, 0], sizes = [31, 128], strides = [1, 1]} : vector<32x128xf32> to vector<31x128xf32>
    %98 = tpu.concatenate %77, %97 in 0 : vector<1x128xf32>, vector<31x128xf32> -> vector<32x128xf32>
    %cst_39 = arith.constant 0.000000e+00 : f32
    %99 = vector.broadcast %cst_39 : f32 to vector<32x128xf32>
    %100 = arith.select %96, %99, %98 : vector<32x128xi1>, vector<32x128xf32>
    %c15_i32_40 = arith.constant 15 : i32
    %101 = vector.broadcast %c15_i32_40 : i32 to vector<32x128xi32>
    %102 = arith.cmpi eq, %94, %101 : vector<32x128xi32>
    %103 = vector.extract_strided_slice %76 {offsets = [1, 0], sizes = [31, 128], strides = [1, 1]} : vector<32x128xf32> to vector<31x128xf32>
    %104 = tpu.concatenate %103, %77 in 0 : vector<31x128xf32>, vector<1x128xf32> -> vector<32x128xf32>
    %cst_41 = arith.constant 0.000000e+00 : f32
    %105 = vector.broadcast %cst_41 : f32 to vector<32x128xf32>
    %106 = arith.select %102, %105, %104 : vector<32x128xi1>, vector<32x128xf32>
    %107 = arith.truncf %100 : vector<32x128xf32> to vector<32x128xbf16>
    %108 = arith.truncf %76 : vector<32x128xf32> to vector<32x128xbf16>
    %109 = arith.truncf %106 : vector<32x128xf32> to vector<32x128xbf16>
    %c0_42 = arith.constant 0 : index
    %c0_43 = arith.constant 0 : index
    %c0_44 = arith.constant 0 : index
    %110 = vector.load %arg3[%c0_42, %c0_43, %c0_44] : memref<3x128x128xbf16, #tpu.memory_space<vmem>>, vector<1x128x128xbf16>
    %111 = vector.shape_cast %110 : vector<1x128x128xbf16> to vector<128x128xbf16>
    %cst_45 = arith.constant dense<0.000000e+00> : vector<32x128xf32>
    %112 = tpu.matmul %107, %111, %cst_45 {dimension_numbers = #tpu.dot_dimension_numbers<[1], [0], [0], [1], [0, 0, 1, 1], [], []>} : vector<32x128xbf16>, vector<128x128xbf16>, vector<32x128xf32> -> vector<32x128xf32>
    %c1_46 = arith.constant 1 : index
    %c0_47 = arith.constant 0 : index
    %c0_48 = arith.constant 0 : index
    %113 = vector.load %arg3[%c1_46, %c0_47, %c0_48] : memref<3x128x128xbf16, #tpu.memory_space<vmem>>, vector<1x128x128xbf16>
    %114 = vector.shape_cast %113 : vector<1x128x128xbf16> to vector<128x128xbf16>
    %cst_49 = arith.constant dense<0.000000e+00> : vector<32x128xf32>
    %115 = tpu.matmul %108, %114, %cst_49 {dimension_numbers = #tpu.dot_dimension_numbers<[1], [0], [0], [1], [0, 0, 1, 1], [], []>} : vector<32x128xbf16>, vector<128x128xbf16>, vector<32x128xf32> -> vector<32x128xf32>
    %116 = arith.addf %112, %115 : vector<32x128xf32>
    %c2_50 = arith.constant 2 : index
    %c0_51 = arith.constant 0 : index
    %c0_52 = arith.constant 0 : index
    %117 = vector.load %arg3[%c2_50, %c0_51, %c0_52] : memref<3x128x128xbf16, #tpu.memory_space<vmem>>, vector<1x128x128xbf16>
    %118 = vector.shape_cast %117 : vector<1x128x128xbf16> to vector<128x128xbf16>
    %cst_53 = arith.constant dense<0.000000e+00> : vector<32x128xf32>
    %119 = tpu.matmul %109, %118, %cst_53 {dimension_numbers = #tpu.dot_dimension_numbers<[1], [0], [0], [1], [0, 0, 1, 1], [], []>} : vector<32x128xbf16>, vector<128x128xbf16>, vector<32x128xf32> -> vector<32x128xf32>
    %120 = arith.addf %116, %119 : vector<32x128xf32>
    %cst_54 = arith.constant dense<0.000000e+00> : vector<128xf32>
    %121 = vector.multi_reduction <add>, %120, %cst_54 [0] : vector<32x128xf32> to vector<128xf32>
    %122 = vector.shape_cast %121 : vector<128xf32> to vector<1x128xf32>
    %123 = arith.mulf %120, %120 : vector<32x128xf32>
    %cst_55 = arith.constant dense<0.000000e+00> : vector<128xf32>
    %124 = vector.multi_reduction <add>, %123, %cst_55 [0] : vector<32x128xf32> to vector<128xf32>
    %125 = vector.shape_cast %124 : vector<128xf32> to vector<1x128xf32>
    %126 = tpu.concatenate %122, %125 in 0 : vector<1x128xf32>, vector<1x128xf32> -> vector<2x128xf32>
    %c0_56 = arith.constant 0 : index
    %c0_57 = arith.constant 0 : index
    %127 = vector.load %arg6[%c0_56, %c0_57] : memref<1x128xf32, #tpu.memory_space<vmem>>, vector<1x128xf32>
    %c0_58 = arith.constant 0 : index
    %c0_59 = arith.constant 0 : index
    %128 = vector.load %arg7[%c0_58, %c0_59] : memref<1x128xf32, #tpu.memory_space<vmem>>, vector<1x128xf32>
    %cst_60 = arith.constant dense<0.000000e+00> : vector<2x128xf32>
    %129 = tpu.matmul %126, %1, %cst_60 {dimension_numbers = #tpu.dot_dimension_numbers<[1], [0], [0], [1], [0, 0, 1, 1], [], []>} : vector<2x128xf32>, vector<128x128xf32>, vector<2x128xf32> -> vector<2x128xf32>
    %130 = vector.extract_strided_slice %129 {offsets = [0, 0], sizes = [1, 128], strides = [1, 1]} : vector<2x128xf32> to vector<1x128xf32>
    %cst_61 = arith.constant 0.001953125 : f32
    %131 = vector.broadcast %cst_61 : f32 to vector<1x128xf32>
    %132 = arith.mulf %130, %131 : vector<1x128xf32>
    %133 = vector.extract_strided_slice %129 {offsets = [1, 0], sizes = [1, 128], strides = [1, 1]} : vector<2x128xf32> to vector<1x128xf32>
    %cst_62 = arith.constant 0.001953125 : f32
    %134 = vector.broadcast %cst_62 : f32 to vector<1x128xf32>
    %135 = arith.mulf %133, %134 : vector<1x128xf32>
    %136 = arith.mulf %132, %132 : vector<1x128xf32>
    %137 = arith.subf %135, %136 : vector<1x128xf32>
    %cst_63 = arith.constant 0.000000e+00 : f32
    %138 = vector.broadcast %cst_63 : f32 to vector<1x128xf32>
    %139 = arith.maximumf %137, %138 : vector<1x128xf32>
    %cst_64 = arith.constant 9.99999974E-6 : f32
    %140 = vector.broadcast %cst_64 : f32 to vector<1x128xf32>
    %141 = arith.addf %139, %140 : vector<1x128xf32>
    %142 = math.rsqrt %141 : vector<1x128xf32>
    %143 = arith.mulf %127, %142 : vector<1x128xf32>
    %144 = arith.mulf %132, %143 : vector<1x128xf32>
    %145 = arith.subf %128, %144 : vector<1x128xf32>
    %146 = vector.broadcast %143 : vector<1x128xf32> to vector<32x128xf32>
    %147 = arith.mulf %120, %146 : vector<32x128xf32>
    %148 = vector.broadcast %145 : vector<1x128xf32> to vector<32x128xf32>
    %149 = arith.addf %147, %148 : vector<32x128xf32>
    %cst_65 = arith.constant 0.000000e+00 : f32
    %150 = vector.broadcast %cst_65 : f32 to vector<32x128xf32>
    %151 = arith.maximumf %149, %150 : vector<32x128xf32>
    %152 = arith.addf %0, %151 : vector<32x128xf32>
    %cst_66 = arith.constant 0.000000e+00 : f32
    %153 = vector.broadcast %cst_66 : f32 to vector<32x128xf32>
    %154 = arith.maximumf %152, %153 : vector<32x128xf32>
    %c0_67 = arith.constant 0 : index
    %c0_68 = arith.constant 0 : index
    %155 = vector.load %arg9[%c0_67, %c0_68] : memref<32x128xf32, #tpu.memory_space<vmem>>, vector<32x128xf32>
    tpu.vector_store %arg9[%c0_67, %c0_68], %154 {strides = array<i32>} : memref<32x128xf32, #tpu.memory_space<vmem>>, vector<32x128xf32>,
    return
  }
  func.func @transform_0(%arg0: i32) -> (i32, i32) {
    %c0_i32 = arith.constant 0 : i32
    %c0_i32_0 = arith.constant 0 : i32
    %c0_i32_1 = arith.constant 0 : i32
    return %c0_i32, %c0_i32_0 : i32, i32
  }
  func.func @transform_1(%arg0: i32) -> (i32, i32, i32) {
    %c0_i32 = arith.constant 0 : i32
    %c0_i32_0 = arith.constant 0 : i32
    %c0_i32_1 = arith.constant 0 : i32
    %c0_i32_2 = arith.constant 0 : i32
    return %c0_i32, %c0_i32_0, %c0_i32_1 : i32, i32, i32
  }
  func.func @transform_2(%arg0: i32) -> (i32, i32, i32) {
    %c0_i32 = arith.constant 0 : i32
    %c0_i32_0 = arith.constant 0 : i32
    %c0_i32_1 = arith.constant 0 : i32
    %c0_i32_2 = arith.constant 0 : i32
    return %c0_i32, %c0_i32_0, %c0_i32_1 : i32, i32, i32
  }
  func.func @transform_3(%arg0: i32) -> (i32, i32) {
    %c0_i32 = arith.constant 0 : i32
    %c0_i32_0 = arith.constant 0 : i32
    %c0_i32_1 = arith.constant 0 : i32
    return %c0_i32, %c0_i32_0 : i32, i32
  }
  func.func @transform_4(%arg0: i32) -> (i32, i32) {
    %c0_i32 = arith.constant 0 : i32
    %c0_i32_0 = arith.constant 0 : i32
    %c0_i32_1 = arith.constant 0 : i32
    return %c0_i32, %c0_i32_0 : i32, i32
  }
  func.func @transform_5(%arg0: i32) -> (i32, i32) {
    %c0_i32 = arith.constant 0 : i32
    %c0_i32_0 = arith.constant 0 : i32
    %c0_i32_1 = arith.constant 0 : i32
    return %c0_i32, %c0_i32_0 : i32, i32
  }
  func.func @transform_6(%arg0: i32) -> (i32, i32) {
    %c0_i32 = arith.constant 0 : i32
    %c0_i32_0 = arith.constant 0 : i32
    %c0_i32_1 = arith.constant 0 : i32
    return %c0_i32, %c0_i32_0 : i32, i32
  }
  func.func @transform_7(%arg0: i32) -> (i32, i32) {
    %c0_i32 = arith.constant 0 : i32
    %c0_i32_0 = arith.constant 0 : i32
    %c0_i32_1 = arith.constant 0 : i32
    return %c0_i32, %c0_i32_0 : i32, i32
  }
  func.func @transform_8(%arg0: i32) -> (i32, i32) {
    %c0_i32 = arith.constant 0 : i32
    %c0_i32_0 = arith.constant 0 : i32
    %c0_i32_1 = arith.constant 0 : i32
    return %c0_i32, %c0_i32_0 : i32, i32
  }
}

</mosaic_0001>

<llo_original>
// kernel: tile.23
$region0: #{tile.23}
  #allocation0 [shape = 's32[1]{0}', space=sflag, size = 0x4, scoped, tag = 'scoped memory for tile.23']
  %s0 = inlined_call_operand.vmem [shape: f32[8], index: 0, kind: input, shape index: {}]
  %s1 = inlined_call_operand.vmem [shape: f32[16,8], index: 1, kind: output, shape index: {}]
  // Predicated region
  $region2: #{tile.23} parent=0 // pred_check
    _
  $region3: #{tile.23} parent=0 // pred_check_branch
    %3 = sbr.rel (0) target = $region5
  $region4: #{tile.23} parent=0 // pred_region
    _
  $region5: #{tile.23} parent=0 // pred_fallthru
    _
  %v4 = vld [vmem:[%s0] ss:$0 sm:$0xff]
  %5 = vst [vmem:[%s1] sm:$0xff] %v4
  %s6 = scalar_lea.vmem %s1, 8
  %7 = vst [vmem:[%s6] sm:$0xff] %v4

// kernel: tile.24
$region0: #{tile.24}
  %s0 = inlined_call_operand.vmem [shape: f32[16,8], index: 0, kind: input, shape index: {}]
  %s1 = inlined_call_operand.vmem [shape: f32[1,128], index: 1, kind: output, shape index: {}]
  $region1: #{tile.24} parent=0
    #allocation0 [shape = 'u8[4096]{0}', space=vmem, size = 0x1000, scoped, tag = 'scoped mem for output reshape']
    %v2 = vld [vmem:[%s0] sm:$0x1]
    %vm3 = vcmask 64512
    %4 = vst.msk [vmem:[#allocation0] sm:$0x1] %vm3, %v2
    %s5 = scalar_lea.vmem %s0, 15
    %v6 = vld [vmem:[%s5] sm:$0x1]
    %7 = vrot.lane.b32.xlu0 %v6, 120
    %v8 = vpop.permute.xlu0 %7
    %vm9 = vcmask 1048512
    %10 = vst.msk [vmem:[#allocation0] sm:$0x1] %vm9, %v8
    %s11 = scalar_lea.vmem %s0, 14
    %v12 = vld [vmem:[%s11] sm:$0x1]
    %13 = vrot.lane.b32.xlu0 %v12, 112
    %v14 = vpop.permute.xlu0 %13
    %vm15 = vcmask 982912
    %16 = vst.msk [vmem:[#allocation0] sm:$0x1] %vm15, %v14
    %s17 = scalar_lea.vmem %s0, 13
    %v18 = vld [vmem:[%s17] sm:$0x1]
    %19 = vrot.lane.b32.xlu0 %v18, 104
    %v20 = vpop.permute.xlu0 %19
    %vm21 = vcmask 917312
    %22 = vst.msk [vmem:[#allocation0] sm:$0x1] %vm21, %v20
    %s23 = scalar_lea.vmem %s0, 12
    %v24 = vld [vmem:[%s23] sm:$0x1]
    %25 = vrot.lane.b32.xlu0 %v24, 96
    %v26 = vpop.permute.xlu0 %25
    %vm27 = vcmask 851712
    %28 = vst.msk [vmem:[#allocation0] sm:$0x1] %vm27, %v26
    %s29 = scalar_lea.vmem %s0, 11
    %v30 = vld [vmem:[%s29] sm:$0x1]
    %31 = vrot.lane.b32.xlu0 %v30, 88
    %v32 = vpop.permute.xlu0 %31
    %vm33 = vcmask 786112
    %34 = vst.msk [vmem:[#allocation0] sm:$0x1] %vm33, %v32
    %s35 = scalar_lea.vmem %s0, 10
    %v36 = vld [vmem:[%s35] sm:$0x1]
    %37 = vrot.lane.b32.xlu0 %v36, 80
    %v38 = vpop.permute.xlu0 %37
    %vm39 = vcmask 720512
    %40 = vst.msk [vmem:[#allocation0] sm:$0x1] %vm39, %v38
    %s41 = scalar_lea.vmem %s0, 9
    %v42 = vld [vmem:[%s41] sm:$0x1]
    %43 = vrot.lane.b32.xlu0 %v42, 72
    %v44 = vpop.permute.xlu0 %43
    %vm45 = vcmask 654912
    %46 = vst.msk [vmem:[#allocation0] sm:$0x1] %vm45, %v44
    %s47 = scalar_lea.vmem %s0, 8
    %v48 = vld [vmem:[%s47] sm:$0x1]
    %49 = vrot.lane.b32.xlu0 %v48, 64
    %v50 = vpop.permute.xlu0 %49
    %vm51 = vcmask 589312
    %52 = vst.msk [vmem:[#allocation0] sm:$0x1] %vm51, %v50
    %s53 = scalar_lea.vmem %s0, 7
    %v54 = vld [vmem:[%s53] sm:$0x1]
    %55 = vrot.lane.b32.xlu0 %v54, 56
    %v56 = vpop.permute.xlu0 %55
    %vm57 = vcmask 523712
    %58 = vst.msk [vmem:[#allocation0] sm:$0x1] %vm57, %v56
    %s59 = scalar_lea.vmem %s0, 6
    %v60 = vld [vmem:[%s59] sm:$0x1]
    %61 = vrot.lane.b32.xlu0 %v60, 48
    %v62 = vpop.permute.xlu0 %61
    %vm63 = vcmask 458112
    %64 = vst.msk [vmem:[#allocation0] sm:$0x1] %vm63, %v62
    %s65 = scalar_lea.vmem %s0, 5
    %v66 = vld [vmem:[%s65] sm:$0x1]
    %67 = vrot.lane.b32.xlu0 %v66, 40
    %v68 = vpop.permute.xlu0 %67
    %vm69 = vcmask 392512
    %70 = vst.msk [vmem:[#allocation0] sm:$0x1] %vm69, %v68
    %s71 = scalar_lea.vmem %s0, 4
    %v72 = vld [vmem:[%s71] sm:$0x1]
    %73 = vrot.lane.b32.xlu0 %v72, 32
    %v74 = vpop.permute.xlu0 %73
    %vm75 = vcmask 326912
    %76 = vst.msk [vmem:[#allocation0] sm:$0x1] %vm75, %v74
    %s77 = scalar_lea.vmem %s0, 3
    %v78 = vld [vmem:[%s77] sm:$0x1]
    %79 = vrot.lane.b32.xlu0 %v78, 24
    %v80 = vpop.permute.xlu0 %79
    %vm81 = vcmask 261312
    %82 = vst.msk [vmem:[#allocation0] sm:$0x1] %vm81, %v80
    %s83 = scalar_lea.vmem %s0, 2
    %v84 = vld [vmem:[%s83] sm:$0x1]
    %85 = vrot.lane.b32.xlu0 %v84, 16
    %v86 = vpop.permute.xlu0 %85
    %vm87 = vcmask 195712
    %88 = vst.msk [vmem:[#allocation0] sm:$0x1] %vm87, %v86
    %s89 = scalar_lea.vmem %s0, 1
    %v90 = vld [vmem:[%s89] sm:$0x1]
    %91 = vrot.lane.b32.xlu0 %v90, 8
    %v92 = vpop.permute.xlu0 %91
    %vm93 = vcmask 130112
    %94 = vst.msk [vmem:[#allocation0] sm:$0x1] %vm93, %v92
    %s96 = sshll.u32 1, 1
    %s97 = ssub.s32 %s96, 1
    %v99 = vld [vmem:[#allocation0] sm:%s97]
    %s100 = sshll.u32 1, 1
    %s101 = ssub.s32 %s100, 1
    %102 = vst [vmem:[%s1] sm:%s101] %v99

// kernel: residual_block_forward.1
$region0: #{residual_block_forward.1}
  #allocation0 [shape = 'u32[]', space=smem, size = 0x4, offset = 0x4, fixed_abs, tag = 'smem constant byte address 0x4 - core index']
  #allocation1 [shape = 'u32[144,128]{1,0:T(1,128)}', space=vmem, size = 0x12000, scoped, tag = 'internal scratch']
  %s0 = inlined_call_operand.vmem [shape: f32[32,128], index: 0, kind: input, shape index: {}]
  %s1 = inlined_call_operand.vmem [shape: bf16[3,128,128], index: 1, kind: input, shape index: {}]
  %s2 = inlined_call_operand.vmem [shape: bf16[3,128,128], index: 2, kind: input, shape index: {}]
  %s3 = inlined_call_operand.vmem [shape: f32[1,128], index: 3, kind: input, shape index: {}]
  %s4 = inlined_call_operand.vmem [shape: f32[1,128], index: 4, kind: input, shape index: {}]
  %s5 = inlined_call_operand.vmem [shape: f32[1,128], index: 5, kind: input, shape index: {}]
  %s6 = inlined_call_operand.vmem [shape: f32[1,128], index: 6, kind: input, shape index: {}]
  %s7 = inlined_call_operand.vmem [shape: f32[128,128], index: 7, kind: input, shape index: {}]
  %s8 = inlined_call_operand.vmem [shape: f32[32,128], index: 8, kind: output, shape index: {}]
  %s9 = sld [smem:[#allocation0]]
  $region42: #{residual_block_forward.1} parent=0
    _
  %s11 = ssub.s32 1, %s9
  %s12 = scalar_select 0, %s11, %s9
  // Predicated region
  $region2: #{residual_block_forward.1} parent=0 // pred_check
    _
  $region3: #{residual_block_forward.1} parent=0 // pred_check_branch
    %14 = sbr.rel (0) target = $region5
  $region4: #{residual_block_forward.1} parent=0 // pred_region
    _
  $region5: #{residual_block_forward.1} parent=0 // pred_fallthru
    _
  // Predicated region
  $region6: #{residual_block_forward.1} parent=0 // pred_check
    _
  $region7: #{residual_block_forward.1} parent=0 // pred_check_branch
    %16 = sbr.rel (0) target = $region9
  $region8: #{residual_block_forward.1} parent=0 // pred_region
    _
  $region9: #{residual_block_forward.1} parent=0 // pred_fallthru
    _
  // Predicated region
  $region10: #{residual_block_forward.1} parent=0 // pred_check
    _
  $region11: #{residual_block_forward.1} parent=0 // pred_check_branch
    %18 = sbr.rel (0) target = $region13
  $region12: #{residual_block_forward.1} parent=0 // pred_region
    _
  $region13: #{residual_block_forward.1} parent=0 // pred_fallthru
    _
  // Predicated region
  $region14: #{residual_block_forward.1} parent=0 // pred_check
    _
  $region15: #{residual_block_forward.1} parent=0 // pred_check_branch
    %20 = sbr.rel (0) target = $region17
  $region16: #{residual_block_forward.1} parent=0 // pred_region
    _
  $region17: #{residual_block_forward.1} parent=0 // pred_fallthru
    _
  // Predicated region
  $region18: #{residual_block_forward.1} parent=0 // pred_check
    _
  $region19: #{residual_block_forward.1} parent=0 // pred_check_branch
    %22 = sbr.rel (0) target = $region21
  $region20: #{residual_block_forward.1} parent=0 // pred_region
    _
  $region21: #{residual_block_forward.1} parent=0 // pred_fallthru
    _
  // Predicated region
  $region22: #{residual_block_forward.1} parent=0 // pred_check
    _
  $region23: #{residual_block_forward.1} parent=0 // pred_check_branch
    %24 = sbr.rel (0) target = $region25
  $region24: #{residual_block_forward.1} parent=0 // pred_region
    _
  $region25: #{residual_block_forward.1} parent=0 // pred_fallthru
    _
  // Predicated region
  $region26: #{residual_block_forward.1} parent=0 // pred_check
    _
  $region27: #{residual_block_forward.1} parent=0 // pred_check_branch
    %26 = sbr.rel (0) target = $region29
  $region28: #{residual_block_forward.1} parent=0 // pred_region
    _
  $region29: #{residual_block_forward.1} parent=0 // pred_fallthru
    _
  // Predicated region
  $region30: #{residual_block_forward.1} parent=0 // pred_check
    _
  $region31: #{residual_block_forward.1} parent=0 // pred_check_branch
    %28 = sbr.rel (0) target = $region33
  $region32: #{residual_block_forward.1} parent=0 // pred_region
    _
  $region33: #{residual_block_forward.1} parent=0 // pred_fallthru
    _
  %v30 = vld [vmem:[%s0] sm:$0xff]
  %v31 = vld [vmem:[%s0 + $0x8] sm:$0xff]
  %v32 = vld [vmem:[%s0 + $0x10] sm:$0xff]
  %v33 = vld [vmem:[%s0 + $0x18] sm:$0xff]
  %v34 = vld [vmem:[%s7] sm:$0xff]
  %v35 = vld [vmem:[%s7 + $0x8] sm:$0xff]
  %v36 = vld [vmem:[%s7 + $0x10] sm:$0xff]
  %v37 = vld [vmem:[%s7 + $0x18] sm:$0xff]
  %v38 = vld [vmem:[%s7 + $0x20] sm:$0xff]
  %v39 = vld [vmem:[%s7 + $0x28] sm:$0xff]
  %v40 = vld [vmem:[%s7 + $0x30] sm:$0xff]
  %v41 = vld [vmem:[%s7 + $0x38] sm:$0xff]
  %v42 = vld [vmem:[%s7 + $0x40] sm:$0xff]
  %v43 = vld [vmem:[%s7 + $0x48] sm:$0xff]
  %v44 = vld [vmem:[%s7 + $0x50] sm:$0xff]
  %v45 = vld [vmem:[%s7 + $0x58] sm:$0xff]
  %v46 = vld [vmem:[%s7 + $0x60] sm:$0xff]
  %v47 = vld [vmem:[%s7 + $0x68] sm:$0xff]
  %v48 = vld [vmem:[%s7 + $0x70] sm:$0xff]
  %v49 = vld [vmem:[%s7 + $0x78] sm:$0xff]
  %v50 = vlaneseq
  %v51 = vshrl.u32 %v50, 7
  %v52 = vadd.s32 %v51, 8
  %v53 = vadd.s32 %v51, 16
  %v54 = vadd.s32 %v51, 24
  %vm55 = vcmp.lt.s32.totalorder %v51, 0
  %v56 = vsub.s32 0, %v51
  %v57 = vsel %vm55, %v56, %v51
  %v58 = vshrl.u32 %v57, 4
  %v59 = vand.u32 %v57, 15
  %v60 = vsub.s32 0, %v59
  %v61 = vsel %vm55, %v60, %v59
  %vm62 = vcmp.lt.s32.totalorder %v52, 0
  %v63 = vsub.s32 0, %v52
  %v64 = vsel %vm62, %v63, %v52
  %v65 = vshrl.u32 %v64, 4
  %v66 = vand.u32 %v64, 15
  %v67 = vsub.s32 0, %v66
  %v68 = vsel %vm62, %v67, %v66
  %vm69 = vcmp.lt.s32.totalorder %v53, 0
  %v70 = vsub.s32 0, %v53
  %v71 = vsel %vm69, %v70, %v53
  %v72 = vshrl.u32 %v71, 4
  %v73 = vand.u32 %v71, 15
  %v74 = vsub.s32 0, %v73
  %v75 = vsel %vm69, %v74, %v73
  %vm76 = vcmp.lt.s32.totalorder %v54, 0
  %v77 = vsub.s32 0, %v54
  %v78 = vsel %vm76, %v77, %v54
  %v79 = vshrl.u32 %v78, 4
  %v80 = vand.u32 %v78, 15
  %v81 = vsub.s32 0, %v80
  %v82 = vsel %vm76, %v81, %v80
  %vm83 = vcmp.ne.s32.totalorder %v61, 0
  %vm84 = vcmp.ne.s32.totalorder %v68, 0
  %vm85 = vcmp.ne.s32.totalorder %v75, 0
  %vm86 = vcmp.ne.s32.totalorder %v82, 0
  %vm87 = vcmp.lt.s32.totalorder %v61, 0
  %vm88 = vcmp.lt.s32.totalorder %v68, 0
  %vm89 = vcmp.lt.s32.totalorder %v75, 0
  %vm90 = vcmp.lt.s32.totalorder %v82, 0
  %vm91 = vmand %vm87, %vm83
  %vm92 = vmand %vm88, %vm84
  %vm93 = vmand %vm89, %vm85
  %vm94 = vmand %vm90, %vm86
  %v95 = vadd.s32 %v61, 16
  %v96 = vadd.s32 %v68, 16
  %v97 = vadd.s32 %v75, 16
  %v98 = vadd.s32 %v82, 16
  %v99 = vsel %vm91, %v95, %v61
  %v100 = vsel %vm92, %v96, %v68
  %v101 = vsel %vm93, %v97, %v75
  %v102 = vsel %vm94, %v98, %v82
  %vm103 = vcmp.eq.s32.totalorder %v99, 0
  %vm104 = vcmp.eq.s32.totalorder %v100, 0
  %vm105 = vcmp.eq.s32.totalorder %v101, 0
  %vm106 = vcmp.eq.s32.totalorder %v102, 0
  %vm111 = vcmask 1040384
  %v112 = vrot.slane %v30, 7
  %v113 = vrot.slane %v31, 7
  %v114 = vsel %vm111, %v112, %v113
  %v115 = vrot.slane %v32, 7
  %v116 = vsel %vm111, %v113, %v115
  %v117 = vrot.slane %v33, 7
  %v118 = vsel %vm111, %v115, %v117
  %v123 = vsel %vm111, 0.0, %v112
  %v124 = vsel %vm103, 0.0, %v123
  %v125 = vsel %vm104, 0.0, %v114
  %v126 = vsel %vm105, 0.0, %v116
  %v127 = vsel %vm106, 0.0, %v118
  %vm128 = vcmp.eq.s32.totalorder %v99, 15
  %vm129 = vcmp.eq.s32.totalorder %v100, 15
  %vm130 = vcmp.eq.s32.totalorder %v101, 15
  %vm131 = vcmp.eq.s32.totalorder %v102, 15
  %vm132 = vcmask 1046528
  %v133 = vrot.slane %v30, 1
  %v134 = vrot.slane %v31, 1
  %v135 = vsel %vm132, %v133, %v134
  %v136 = vrot.slane %v32, 1
  %v137 = vsel %vm132, %v134, %v136
  %v138 = vrot.slane %v33, 1
  %v139 = vsel %vm132, %v136, %v138
  %v144 = vsel %vm132, %v138, 0.0
  %v145 = vsel %vm128, 0.0, %v135
  %v146 = vsel %vm129, 0.0, %v137
  %v147 = vsel %vm130, 0.0, %v139
  %v148 = vsel %vm131, 0.0, %v144
  %v149 = vpack.c.bf16 %v125, %v124
  %v150 = vpack.c.bf16 %v127, %v126
  %v151 = vpack.c.bf16 %v31, %v30
  %v152 = vpack.c.bf16 %v33, %v32
  %v153 = vpack.c.bf16 %v146, %v145
  %v154 = vpack.c.bf16 %v148, %v147
  %v155 = vld [vmem:[%s1] sm:$0xf]
  %v156 = vld [vmem:[%s1 + $0x4] sm:$0xf]
  %v157 = vld [vmem:[%s1 + $0x8] sm:$0xf]
  %v158 = vld [vmem:[%s1 + $0xc] sm:$0xf]
  %v159 = vld [vmem:[%s1 + $0x10] sm:$0xf]
  %v160 = vld [vmem:[%s1 + $0x14] sm:$0xf]
  %v161 = vld [vmem:[%s1 + $0x18] sm:$0xf]
  %v162 = vld [vmem:[%s1 + $0x1c] sm:$0xf]
  %v163 = vld [vmem:[%s1 + $0x20] sm:$0xf]
  %v164 = vld [vmem:[%s1 + $0x24] sm:$0xf]
  %v165 = vld [vmem:[%s1 + $0x28] sm:$0xf]
  %v166 = vld [vmem:[%s1 + $0x2c] sm:$0xf]
  %v167 = vld [vmem:[%s1 + $0x30] sm:$0xf]
  %v168 = vld [vmem:[%s1 + $0x34] sm:$0xf]
  %v169 = vld [vmem:[%s1 + $0x38] sm:$0xf]
  %v170 = vld [vmem:[%s1 + $0x3c] sm:$0xf]
  %s171 = scalar_lea.vmem %s1, 64
  %v172 = vld [vmem:[%s171] sm:$0xf]
  %v173 = vld [vmem:[%s171 + $0x4] sm:$0xf]
  %v174 = vld [vmem:[%s171 + $0x8] sm:$0xf]
  %v175 = vld [vmem:[%s171 + $0xc] sm:$0xf]
  %v176 = vld [vmem:[%s171 + $0x10] sm:$0xf]
  %v177 = vld [vmem:[%s171 + $0x14] sm:$0xf]
  %v178 = vld [vmem:[%s171 + $0x18] sm:$0xf]
  %v179 = vld [vmem:[%s171 + $0x1c] sm:$0xf]
  %v180 = vld [vmem:[%s171 + $0x20] sm:$0xf]
  %v181 = vld [vmem:[%s171 + $0x24] sm:$0xf]
  %v182 = vld [vmem:[%s171 + $0x28] sm:$0xf]
  %v183 = vld [vmem:[%s171 + $0x2c] sm:$0xf]
  %v184 = vld [vmem:[%s171 + $0x30] sm:$0xf]
  %v185 = vld [vmem:[%s171 + $0x34] sm:$0xf]
  %v186 = vld [vmem:[%s171 + $0x38] sm:$0xf]
  %v187 = vld [vmem:[%s171 + $0x3c] sm:$0xf]
  %v204 = vunpack.c.l.b16 %v172
  %v205 = vunpack.c.l.b16 %v173
  %v206 = vunpack.c.l.b16 %v174
  %v207 = vunpack.c.l.b16 %v175
  %v208 = vunpack.c.l.b16 %v176
  %v209 = vunpack.c.l.b16 %v177
  %v210 = vunpack.c.l.b16 %v178
  %v211 = vunpack.c.l.b16 %v179
  %v212 = vunpack.c.l.b16 %v180
  %v213 = vunpack.c.l.b16 %v181
  %v214 = vunpack.c.l.b16 %v182
  %v215 = vunpack.c.l.b16 %v183
  %v216 = vunpack.c.l.b16 %v184
  %v217 = vunpack.c.l.b16 %v185
  %v218 = vunpack.c.l.b16 %v186
  %v219 = vunpack.c.l.b16 %v187
  %v220 = vpack.c.b16 %v205, %v204
  %v221 = vpack.c.b16 %v207, %v206
  %v222 = vpack.c.b16 %v209, %v208
  %v223 = vpack.c.b16 %v211, %v210
  %v224 = vpack.c.b16 %v213, %v212
  %v225 = vpack.c.b16 %v215, %v214
  %v226 = vpack.c.b16 %v217, %v216
  %v227 = vpack.c.b16 %v219, %v218
  %236 = vmatprep.subr.bf16.mxu0 0
  %237 = vmatpush1.bf16.msra.mxu0 %v227
  %238 = vmatprep.subr.bf16.mxu0 0
  %239 = vmatpush1.bf16.msra.mxu0 %v226
  %240 = vmatprep.subr.bf16.mxu0 0
  %241 = vmatpush1.bf16.msra.mxu0 %v225
  %242 = vmatprep.subr.bf16.mxu0 0
  %243 = vmatpush1.bf16.msra.mxu0 %v224
  %244 = vmatprep.subr.bf16.mxu0 0
  %245 = vmatpush1.bf16.msra.mxu0 %v223
  %246 = vmatprep.subr.bf16.mxu0 0
  %247 = vmatpush1.bf16.msra.mxu0 %v222
  %248 = vmatprep.subr.bf16.mxu0 0
  %249 = vmatpush1.bf16.msra.mxu0 %v221
  %250 = vmatprep.subr.bf16.mxu0 0
  %251 = vmatpush1.bf16.msra.mxu0 %v220
  %252 = vmatprep.subr.bf16.mxu0 0
  %253 = vmatpush2.bf16.msra.mxu0 0
  %254 = vmatprep.subr.bf16.mxu0 0
  %255 = vmatpush2.bf16.msra.mxu0 0
  %256 = vmatprep.subr.bf16.mxu0 0
  %257 = vmatpush2.bf16.msra.mxu0 0
  %258 = vmatprep.subr.bf16.mxu0 0
  %259 = vmatpush2.bf16.msra.mxu0 0
  %260 = vmatprep.subr.bf16.mxu0 0
  %261 = vmatpush2.bf16.msra.mxu0 0
  %262 = vmatprep.subr.bf16.mxu0 0
  %263 = vmatpush2.bf16.msra.mxu0 0
  %264 = vmatprep.subr.bf16.mxu0 0
  %265 = vmatpush2.bf16.msra.mxu0 0
  %266 = vmatprep.subr.bf16.mxu0 0
  %267 = vmatpush2.bf16.msra.mxu0 0
  %268 = vmatprep.mubr.bf16.mxu0 0
  %269 = vmatmul.mubr.bf16.gmra.mxu0 %v151
  %v270 = vpop.f32.mrf.mxu0
  %v271 = vadd.f32 0.0, %v270
  %v272 = vpop.f32.mrf.mxu0
  %v273 = vpop.f32.mrf.mxu0
  %v274 = vadd.f32 0.0, %v273
  %v275 = vpop.f32.mrf.mxu0
  %276 = vmatprep.mubr.bf16.mxu0 0
  %277 = vmatmul.mubr.bf16.gmra.mxu0 %v152
  %v278 = vpop.f32.mrf.mxu0
  %v279 = vadd.f32 0.0, %v278
  %v280 = vpop.f32.mrf.mxu0
  %v281 = vpop.f32.mrf.mxu0
  %v282 = vadd.f32 0.0, %v281
  %v283 = vpop.f32.mrf.mxu0
  %284 = vdwg.mxu0
  %v301 = vunpack.c.l.b16 %v155
  %v302 = vunpack.c.l.b16 %v156
  %v303 = vunpack.c.l.b16 %v157
  %v304 = vunpack.c.l.b16 %v158
  %v305 = vunpack.c.l.b16 %v159
  %v306 = vunpack.c.l.b16 %v160
  %v307 = vunpack.c.l.b16 %v161
  %v308 = vunpack.c.l.b16 %v162
  %v309 = vunpack.c.l.b16 %v163
  %v310 = vunpack.c.l.b16 %v164
  %v311 = vunpack.c.l.b16 %v165
  %v312 = vunpack.c.l.b16 %v166
  %v313 = vunpack.c.l.b16 %v167
  %v314 = vunpack.c.l.b16 %v168
  %v315 = vunpack.c.l.b16 %v169
  %v316 = vunpack.c.l.b16 %v170
  %v317 = vpack.c.b16 %v302, %v301
  %v318 = vpack.c.b16 %v304, %v303
  %v319 = vpack.c.b16 %v306, %v305
  %v320 = vpack.c.b16 %v308, %v307
  %v321 = vpack.c.b16 %v310, %v309
  %v322 = vpack.c.b16 %v312, %v311
  %v323 = vpack.c.b16 %v314, %v313
  %v324 = vpack.c.b16 %v316, %v315
  %333 = vmatprep.subr.bf16.mxu0 0
  %334 = vmatpush1.bf16.msra.mxu0 %v324
  %335 = vmatprep.subr.bf16.mxu0 0
  %336 = vmatpush1.bf16.msra.mxu0 %v323
  %337 = vmatprep.subr.bf16.mxu0 0
  %338 = vmatpush1.bf16.msra.mxu0 %v322
  %339 = vmatprep.subr.bf16.mxu0 0
  %340 = vmatpush1.bf16.msra.mxu0 %v321
  %341 = vmatprep.subr.bf16.mxu0 0
  %342 = vmatpush1.bf16.msra.mxu0 %v320
  %343 = vmatprep.subr.bf16.mxu0 0
  %344 = vmatpush1.bf16.msra.mxu0 %v319
  %345 = vmatprep.subr.bf16.mxu0 0
  %346 = vmatpush1.bf16.msra.mxu0 %v318
  %347 = vmatprep.subr.bf16.mxu0 0
  %348 = vmatpush1.bf16.msra.mxu0 %v317
  %349 = vmatprep.subr.bf16.mxu0 0
  %350 = vmatpush2.bf16.msra.mxu0 0
  %351 = vmatprep.subr.bf16.mxu0 0
  %352 = vmatpush2.bf16.msra.mxu0 0
  %353 = vmatprep.subr.bf16.mxu0 0
  %354 = vmatpush2.bf16.msra.mxu0 0
  %355 = vmatprep.subr.bf16.mxu0 0
  %356 = vmatpush2.bf16.msra.mxu0 0
  %357 = vmatprep.subr.bf16.mxu0 0
  %358 = vmatpush2.bf16.msra.mxu0 0
  %359 = vmatprep.subr.bf16.mxu0 0
  %360 = vmatpush2.bf16.msra.mxu0 0
  %361 = vmatprep.subr.bf16.mxu0 0
  %362 = vmatpush2.bf16.msra.mxu0 0
  %363 = vmatprep.subr.bf16.mxu0 0
  %364 = vmatpush2.bf16.msra.mxu0 0
  %365 = vmatprep.mubr.bf16.mxu0 0
  %366 = vmatmul.mubr.bf16.gmra.mxu0 %v149
  %v367 = vpop.f32.mrf.mxu0
  %v368 = vadd.f32 %v271, %v367
  %v369 = vpop.f32.mrf.mxu0
  %v370 = vpop.f32.mrf.mxu0
  %v371 = vadd.f32 %v274, %v370
  %v372 = vpop.f32.mrf.mxu0
  %373 = vmatprep.mubr.bf16.mxu0 0
  %374 = vmatmul.mubr.bf16.gmra.mxu0 %v150
  %v375 = vpop.f32.mrf.mxu0
  %v376 = vadd.f32 %v279, %v375
  %v377 = vpop.f32.mrf.mxu0
  %v378 = vpop.f32.mrf.mxu0
  %v379 = vadd.f32 %v282, %v378
  %v380 = vpop.f32.mrf.mxu0
  %381 = vdwg.mxu0
  %s382 = scalar_lea.vmem %s1, 128
  %v383 = vld [vmem:[%s382] sm:$0xf]
  %v384 = vld [vmem:[%s382 + $0x4] sm:$0xf]
  %v385 = vld [vmem:[%s382 + $0x8] sm:$0xf]
  %v386 = vld [vmem:[%s382 + $0xc] sm:$0xf]
  %v387 = vld [vmem:[%s382 + $0x10] sm:$0xf]
  %v388 = vld [vmem:[%s382 + $0x14] sm:$0xf]
  %v389 = vld [vmem:[%s382 + $0x18] sm:$0xf]
  %v390 = vld [vmem:[%s382 + $0x1c] sm:$0xf]
  %v391 = vld [vmem:[%s382 + $0x20] sm:$0xf]
  %v392 = vld [vmem:[%s382 + $0x24] sm:$0xf]
  %v393 = vld [vmem:[%s382 + $0x28] sm:$0xf]
  %v394 = vld [vmem:[%s382 + $0x2c] sm:$0xf]
  %v395 = vld [vmem:[%s382 + $0x30] sm:$0xf]
  %v396 = vld [vmem:[%s382 + $0x34] sm:$0xf]
  %v397 = vld [vmem:[%s382 + $0x38] sm:$0xf]
  %v398 = vld [vmem:[%s382 + $0x3c] sm:$0xf]
  %v415 = vunpack.c.l.b16 %v383
  %v416 = vunpack.c.l.b16 %v384
  %v417 = vunpack.c.l.b16 %v385
  %v418 = vunpack.c.l.b16 %v386
  %v419 = vunpack.c.l.b16 %v387
  %v420 = vunpack.c.l.b16 %v388
  %v421 = vunpack.c.l.b16 %v389
  %v422 = vunpack.c.l.b16 %v390
  %v423 = vunpack.c.l.b16 %v391
  %v424 = vunpack.c.l.b16 %v392
  %v425 = vunpack.c.l.b16 %v393
  %v426 = vunpack.c.l.b16 %v394
  %v427 = vunpack.c.l.b16 %v395
  %v428 = vunpack.c.l.b16 %v396
  %v429 = vunpack.c.l.b16 %v397
  %v430 = vunpack.c.l.b16 %v398
  %v431 = vpack.c.b16 %v416, %v415
  %v432 = vpack.c.b16 %v418, %v417
  %v433 = vpack.c.b16 %v420, %v419
  %v434 = vpack.c.b16 %v422, %v421
  %v435 = vpack.c.b16 %v424, %v423
  %v436 = vpack.c.b16 %v426, %v425
  %v437 = vpack.c.b16 %v428, %v427
  %v438 = vpack.c.b16 %v430, %v429
  %447 = vmatprep.subr.bf16.mxu0 0
  %448 = vmatpush1.bf16.msra.mxu0 %v438
  %449 = vmatprep.subr.bf16.mxu0 0
  %450 = vmatpush1.bf16.msra.mxu0 %v437
  %451 = vmatprep.subr.bf16.mxu0 0
  %452 = vmatpush1.bf16.msra.mxu0 %v436
  %453 = vmatprep.subr.bf16.mxu0 0
  %454 = vmatpush1.bf16.msra.mxu0 %v435
  %455 = vmatprep.subr.bf16.mxu0 0
  %456 = vmatpush1.bf16.msra.mxu0 %v434
  %457 = vmatprep.subr.bf16.mxu0 0
  %458 = vmatpush1.bf16.msra.mxu0 %v433
  %459 = vmatprep.subr.bf16.mxu0 0
  %460 = vmatpush1.bf16.msra.mxu0 %v432
  %461 = vmatprep.subr.bf16.mxu0 0
  %462 = vmatpush1.bf16.msra.mxu0 %v431
  %463 = vmatprep.subr.bf16.mxu0 0
  %464 = vmatpush2.bf16.msra.mxu0 0
  %465 = vmatprep.subr.bf16.mxu0 0
  %466 = vmatpush2.bf16.msra.mxu0 0
  %467 = vmatprep.subr.bf16.mxu0 0
  %468 = vmatpush2.bf16.msra.mxu0 0
  %469 = vmatprep.subr.bf16.mxu0 0
  %470 = vmatpush2.bf16.msra.mxu0 0
  %471 = vmatprep.subr.bf16.mxu0 0
  %472 = vmatpush2.bf16.msra.mxu0 0
  %473 = vmatprep.subr.bf16.mxu0 0
  %474 = vmatpush2.bf16.msra.mxu0 0
  %475 = vmatprep.subr.bf16.mxu0 0
  %476 = vmatpush2.bf16.msra.mxu0 0
  %477 = vmatprep.subr.bf16.mxu0 0
  %478 = vmatpush2.bf16.msra.mxu0 0
  %479 = vmatprep.mubr.bf16.mxu0 0
  %480 = vmatmul.mubr.bf16.gmra.mxu0 %v153
  %v481 = vpop.f32.mrf.mxu0
  %v482 = vadd.f32 0.0, %v481
  %v483 = vpop.f32.mrf.mxu0
  %v484 = vpop.f32.mrf.mxu0
  %v485 = vadd.f32 0.0, %v484
  %v486 = vpop.f32.mrf.mxu0
  %487 = vmatprep.mubr.bf16.mxu0 0
  %488 = vmatmul.mubr.bf16.gmra.mxu0 %v154
  %v489 = vpop.f32.mrf.mxu0
  %v490 = vadd.f32 0.0, %v489
  %v491 = vpop.f32.mrf.mxu0
  %v492 = vpop.f32.mrf.mxu0
  %v493 = vadd.f32 0.0, %v492
  %v494 = vpop.f32.mrf.mxu0
  %495 = vdwg.mxu0
  %v496 = vadd.f32 %v368, %v482
  %v497 = vadd.f32 %v371, %v485
  %v498 = vadd.f32 %v376, %v490
  %v499 = vadd.f32 %v379, %v493
  %v500 = vadd.f32 %v496, %v497
  %v501 = vadd.f32 %v500, %v498
  %v502 = vadd.f32 %v501, %v499
  %v503 = vrot.slane %v502, 4
  %v504 = vadd.f32 %v502, %v503
  %v505 = vrot.slane %v504, 2
  %v506 = vadd.f32 %v504, %v505
  %v507 = vrot.slane %v506, 1
  %v508 = vadd.f32 %v506, %v507
  %v509 = vmul.f32 %v496, %v496
  %v510 = vmul.f32 %v497, %v497
  %v511 = vmul.f32 %v498, %v498
  %v512 = vmul.f32 %v499, %v499
  %v513 = vadd.f32 %v509, %v510
  %v514 = vadd.f32 %v513, %v511
  %v515 = vadd.f32 %v514, %v512
  %v516 = vrot.slane %v515, 4
  %v517 = vadd.f32 %v515, %v516
  %v518 = vrot.slane %v517, 2
  %v519 = vadd.f32 %v517, %v518
  %v520 = vrot.slane %v519, 1
  %v521 = vadd.f32 %v519, %v520
  %v522 = vsel %vm111, %v508, %v521
  %v523 = vld [vmem:[%s3] sm:$0x1]
  %v524 = vld [vmem:[%s4] sm:$0x1]
  %525 = vmatprep.subr.mxu0 0.0
  %526 = vmatpush1.msra.mxu0 %v49
  %527 = vmatprep.subr.mxu0 0.0
  %528 = vmatpush1.msra.mxu0 %v48
  %529 = vmatprep.subr.mxu0 0.0
  %530 = vmatpush1.msra.mxu0 %v47
  %531 = vmatprep.subr.mxu0 0.0
  %532 = vmatpush1.msra.mxu0 %v46
  %533 = vmatprep.subr.mxu0 0.0
  %534 = vmatpush1.msra.mxu0 %v45
  %535 = vmatprep.subr.mxu0 0.0
  %536 = vmatpush1.msra.mxu0 %v44
  %537 = vmatprep.subr.mxu0 0.0
  %538 = vmatpush1.msra.mxu0 %v43
  %539 = vmatprep.subr.mxu0 0.0
  %540 = vmatpush1.msra.mxu0 %v42
  %541 = vmatprep.subr.mxu0 0.0
  %542 = vmatpush1.msra.mxu0 %v41
  %543 = vmatprep.subr.mxu0 0.0
  %544 = vmatpush1.msra.mxu0 %v40
  %545 = vmatprep.subr.mxu0 0.0
  %546 = vmatpush1.msra.mxu0 %v39
  %547 = vmatprep.subr.mxu0 0.0
  %548 = vmatpush1.msra.mxu0 %v38
  %549 = vmatprep.subr.mxu0 0.0
  %550 = vmatpush1.msra.mxu0 %v37
  %551 = vmatprep.subr.mxu0 0.0
  %552 = vmatpush1.msra.mxu0 %v36
  %553 = vmatprep.subr.mxu0 0.0
  %554 = vmatpush1.msra.mxu0 %v35
  %555 = vmatprep.subr.mxu0 0.0
  %556 = vmatpush1.msra.mxu0 %v34
  %557 = vmatprep.subr.mxu0 0.0
  %558 = vmatpush2.msra.mxu0 0.0
  %559 = vmatprep.subr.mxu0 0.0
  %560 = vmatpush2.msra.mxu0 0.0
  %561 = vmatprep.subr.mxu0 0.0
  %562 = vmatpush2.msra.mxu0 0.0
  %563 = vmatprep.subr.mxu0 0.0
  %564 = vmatpush2.msra.mxu0 0.0
  %565 = vmatprep.subr.mxu0 0.0
  %566 = vmatpush2.msra.mxu0 0.0
  %567 = vmatprep.subr.mxu0 0.0
  %568 = vmatpush2.msra.mxu0 0.0
  %569 = vmatprep.subr.mxu0 0.0
  %570 = vmatpush2.msra.mxu0 0.0
  %571 = vmatprep.subr.mxu0 0.0
  %572 = vmatpush2.msra.mxu0 0.0
  %573 = vmatprep.subr.mxu0 0.0
  %574 = vmatpush2.msra.mxu0 0.0
  %575 = vmatprep.subr.mxu0 0.0
  %576 = vmatpush2.msra.mxu0 0.0
  %577 = vmatprep.subr.mxu0 0.0
  %578 = vmatpush2.msra.mxu0 0.0
  %579 = vmatprep.subr.mxu0 0.0
  %580 = vmatpush2.msra.mxu0 0.0
  %581 = vmatprep.subr.mxu0 0.0
  %582 = vmatpush2.msra.mxu0 0.0
  %583 = vmatprep.subr.mxu0 0.0
  %584 = vmatpush2.msra.mxu0 0.0
  %585 = vmatprep.subr.mxu0 0.0
  %586 = vmatpush2.msra.mxu0 0.0
  %587 = vmatprep.subr.mxu0 0.0
  %588 = vmatpush2.msra.mxu0 0.0
  %589 = vmatprep.mubr.f32.mxu0 0.0
  %590 = vmatmul.mubr.f32.gmra.mxu0 %v522
  %v591 = vpop.f32.mrf.mxu0
  %v592 = vadd.f32 0.0, %v591
  %v593 = vpop.f32.mrf.mxu0
  %594 = vdwg.mxu0
  %v595 = vmul.f32 %v592, 0.001953125
  %v596 = vmul.f32 %v595, %v595
  %v598 = vrot.slane %v596, 7
  %v600 = vsub.f32 %v595, %v598
  %v601 = vmax.f32 %v600, 0.0
  %v602 = vadd.f32 %v601, 1e-05
  %v603 = vrsqrt.pop %v602
  %v606 = vunpack.c.l.s4 1966171168
  %v607 = vunpack.c.0.s8 %v606
  %v608 = vlaneseq
  %v609 = vshrl.u32 %v608, 7
  %v610 = vsub.s32 %v607, %v609
  %v611 = vrot.slane %v603, %v610
  %v612 = vcombine.high %v611, %v611
  %v614 = vunpack.c.l.s4 1966171168
  %v615 = vunpack.c.0.s8 %v614
  %v616 = vlaneseq
  %v617 = vshrl.u32 %v616, 7
  %v618 = vsub.s32 %v615, %v617
  %v619 = vrot.slane %v612, %v618
  %v621 = vmul.f32 %v523, %v619
  %v622 = vmul.f32 %v595, %v621
  %v623 = vsub.f32 %v524, %v622
  %v625 = vlaneseq
  %v626 = vshrl.u32 %v625, 7
  %v627 = vsub.s32 0, %v626
  %v628 = vrot.slane %v621, %v627
  %v630 = vmul.f32 %v496, %v628
  %v631 = vmul.f32 %v497, %v628
  %v632 = vmul.f32 %v498, %v628
  %v633 = vmul.f32 %v499, %v628
  %v635 = vlaneseq
  %v636 = vshrl.u32 %v635, 7
  %v637 = vsub.s32 0, %v636
  %v638 = vrot.slane %v623, %v637
  %v640 = vadd.f32 %v630, %v638
  %v641 = vadd.f32 %v631, %v638
  %v642 = vadd.f32 %v632, %v638
  %v643 = vadd.f32 %v633, %v638
  %v644 = vmax.f32 %v640, 0.0
  %v645 = vmax.f32 %v641, 0.0
  %v646 = vmax.f32 %v642, 0.0
  %v647 = vmax.f32 %v643, 0.0
  %v652 = vrot.slane %v644, 7
  %v653 = vrot.slane %v645, 7
  %v654 = vsel %vm111, %v652, %v653
  %v655 = vrot.slane %v646, 7
  %v656 = vsel %vm111, %v653, %v655
  %v657 = vrot.slane %v647, 7
  %v658 = vsel %vm111, %v655, %v657
  %v663 = vsel %vm111, 0.0, %v652
  %v664 = vsel %vm103, 0.0, %v663
  %v665 = vsel %vm104, 0.0, %v654
  %v666 = vsel %vm105, 0.0, %v656
  %v667 = vsel %vm106, 0.0, %v658
  %v668 = vrot.slane %v644, 1
  %v669 = vrot.slane %v645, 1
  %v670 = vsel %vm132, %v668, %v669
  %v671 = vrot.slane %v646, 1
  %v672 = vsel %vm132, %v669, %v671
  %v673 = vrot.slane %v647, 1
  %v674 = vsel %vm132, %v671, %v673
  %v679 = vsel %vm132, %v673, 0.0
  %v680 = vsel %vm128, 0.0, %v670
  %v681 = vsel %vm129, 0.0, %v672
  %v682 = vsel %vm130, 0.0, %v674
  %v683 = vsel %vm131, 0.0, %v679
  %v684 = vpack.c.bf16 %v665, %v664
  %v685 = vpack.c.bf16 %v667, %v666
  %v686 = vpack.c.bf16 %v645, %v644
  %v687 = vpack.c.bf16 %v647, %v646
  %v688 = vpack.c.bf16 %v681, %v680
  %v689 = vpack.c.bf16 %v683, %v682
  %v690 = vld [vmem:[%s2] sm:$0xf]
  %v691 = vld [vmem:[%s2 + $0x4] sm:$0xf]
  %v692 = vld [vmem:[%s2 + $0x8] sm:$0xf]
  %v693 = vld [vmem:[%s2 + $0xc] sm:$0xf]
  %v694 = vld [vmem:[%s2 + $0x10] sm:$0xf]
  %v695 = vld [vmem:[%s2 + $0x14] sm:$0xf]
  %v696 = vld [vmem:[%s2 + $0x18] sm:$0xf]
  %v697 = vld [vmem:[%s2 + $0x1c] sm:$0xf]
  %v698 = vld [vmem:[%s2 + $0x20] sm:$0xf]
  %v699 = vld [vmem:[%s2 + $0x24] sm:$0xf]
  %v700 = vld [vmem:[%s2 + $0x28] sm:$0xf]
  %v701 = vld [vmem:[%s2 + $0x2c] sm:$0xf]
  %v702 = vld [vmem:[%s2 + $0x30] sm:$0xf]
  %v703 = vld [vmem:[%s2 + $0x34] sm:$0xf]
  %v704 = vld [vmem:[%s2 + $0x38] sm:$0xf]
  %v705 = vld [vmem:[%s2 + $0x3c] sm:$0xf]
  %s706 = scalar_lea.vmem %s2, 64
  %v707 = vld [vmem:[%s706] sm:$0xf]
  %v708 = vld [vmem:[%s706 + $0x4] sm:$0xf]
  %v709 = vld [vmem:[%s706 + $0x8] sm:$0xf]
  %v710 = vld [vmem:[%s706 + $0xc] sm:$0xf]
  %v711 = vld [vmem:[%s706 + $0x10] sm:$0xf]
  %v712 = vld [vmem:[%s706 + $0x14] sm:$0xf]
  %v713 = vld [vmem:[%s706 + $0x18] sm:$0xf]
  %v714 = vld [vmem:[%s706 + $0x1c] sm:$0xf]
  %v715 = vld [vmem:[%s706 + $0x20] sm:$0xf]
  %v716 = vld [vmem:[%s706 + $0x24] sm:$0xf]
  %v717 = vld [vmem:[%s706 + $0x28] sm:$0xf]
  %v718 = vld [vmem:[%s706 + $0x2c] sm:$0xf]
  %v719 = vld [vmem:[%s706 + $0x30] sm:$0xf]
  %v720 = vld [vmem:[%s706 + $0x34] sm:$0xf]
  %v721 = vld [vmem:[%s706 + $0x38] sm:$0xf]
  %v722 = vld [vmem:[%s706 + $0x3c] sm:$0xf]
  %v739 = vunpack.c.l.b16 %v707
  %v740 = vunpack.c.l.b16 %v708
  %v741 = vunpack.c.l.b16 %v709
  %v742 = vunpack.c.l.b16 %v710
  %v743 = vunpack.c.l.b16 %v711
  %v744 = vunpack.c.l.b16 %v712
  %v745 = vunpack.c.l.b16 %v713
  %v746 = vunpack.c.l.b16 %v714
  %v747 = vunpack.c.l.b16 %v715
  %v748 = vunpack.c.l.b16 %v716
  %v749 = vunpack.c.l.b16 %v717
  %v750 = vunpack.c.l.b16 %v718
  %v751 = vunpack.c.l.b16 %v719
  %v752 = vunpack.c.l.b16 %v720
  %v753 = vunpack.c.l.b16 %v721
  %v754 = vunpack.c.l.b16 %v722
  %v755 = vpack.c.b16 %v740, %v739
  %v756 = vpack.c.b16 %v742, %v741
  %v757 = vpack.c.b16 %v744, %v743
  %v758 = vpack.c.b16 %v746, %v745
  %v759 = vpack.c.b16 %v748, %v747
  %v760 = vpack.c.b16 %v750, %v749
  %v761 = vpack.c.b16 %v752, %v751
  %v762 = vpack.c.b16 %v754, %v753
  %771 = vmatprep.subr.bf16.mxu0 0
  %772 = vmatpush1.bf16.msra.mxu0 %v762
  %773 = vmatprep.subr.bf16.mxu0 0
  %774 = vmatpush1.bf16.msra.mxu0 %v761
  %775 = vmatprep.subr.bf16.mxu0 0
  %776 = vmatpush1.bf16.msra.mxu0 %v760
  %777 = vmatprep.subr.bf16.mxu0 0
  %778 = vmatpush1.bf16.msra.mxu0 %v759
  %779 = vmatprep.subr.bf16.mxu0 0
  %780 = vmatpush1.bf16.msra.mxu0 %v758
  %781 = vmatprep.subr.bf16.mxu0 0
  %782 = vmatpush1.bf16.msra.mxu0 %v757
  %783 = vmatprep.subr.bf16.mxu0 0
  %784 = vmatpush1.bf16.msra.mxu0 %v756
  %785 = vmatprep.subr.bf16.mxu0 0
  %786 = vmatpush1.bf16.msra.mxu0 %v755
  %787 = vmatprep.subr.bf16.mxu0 0
  %788 = vmatpush2.bf16.msra.mxu0 0
  %789 = vmatprep.subr.bf16.mxu0 0
  %790 = vmatpush2.bf16.msra.mxu0 0
  %791 = vmatprep.subr.bf16.mxu0 0
  %792 = vmatpush2.bf16.msra.mxu0 0
  %793 = vmatprep.subr.bf16.mxu0 0
  %794 = vmatpush2.bf16.msra.mxu0 0
  %795 = vmatprep.subr.bf16.mxu0 0
  %796 = vmatpush2.bf16.msra.mxu0 0
  %797 = vmatprep.subr.bf16.mxu0 0
  %798 = vmatpush2.bf16.msra.mxu0 0
  %799 = vmatprep.subr.bf16.mxu0 0
  %800 = vmatpush2.bf16.msra.mxu0 0
  %801 = vmatprep.subr.bf16.mxu0 0
  %802 = vmatpush2.bf16.msra.mxu0 0
  %803 = vmatprep.mubr.bf16.mxu0 0
  %804 = vmatmul.mubr.bf16.gmra.mxu0 %v686
  %v805 = vpop.f32.mrf.mxu0
  %v806 = vadd.f32 0.0, %v805
  %v807 = vpop.f32.mrf.mxu0
  %v808 = vpop.f32.mrf.mxu0
  %v809 = vadd.f32 0.0, %v808
  %v810 = vpop.f32.mrf.mxu0
  %811 = vmatprep.mubr.bf16.mxu0 0
  %812 = vmatmul.mubr.bf16.gmra.mxu0 %v687
  %v813 = vpop.f32.mrf.mxu0
  %v814 = vadd.f32 0.0, %v813
  %v815 = vpop.f32.mrf.mxu0
  %v816 = vpop.f32.mrf.mxu0
  %v817 = vadd.f32 0.0, %v816
  %v818 = vpop.f32.mrf.mxu0
  %819 = vdwg.mxu0
  %v836 = vunpack.c.l.b16 %v690
  %v837 = vunpack.c.l.b16 %v691
  %v838 = vunpack.c.l.b16 %v692
  %v839 = vunpack.c.l.b16 %v693
  %v840 = vunpack.c.l.b16 %v694
  %v841 = vunpack.c.l.b16 %v695
  %v842 = vunpack.c.l.b16 %v696
  %v843 = vunpack.c.l.b16 %v697
  %v844 = vunpack.c.l.b16 %v698
  %v845 = vunpack.c.l.b16 %v699
  %v846 = vunpack.c.l.b16 %v700
  %v847 = vunpack.c.l.b16 %v701
  %v848 = vunpack.c.l.b16 %v702
  %v849 = vunpack.c.l.b16 %v703
  %v850 = vunpack.c.l.b16 %v704
  %v851 = vunpack.c.l.b16 %v705
  %v852 = vpack.c.b16 %v837, %v836
  %v853 = vpack.c.b16 %v839, %v838
  %v854 = vpack.c.b16 %v841, %v840
  %v855 = vpack.c.b16 %v843, %v842
  %v856 = vpack.c.b16 %v845, %v844
  %v857 = vpack.c.b16 %v847, %v846
  %v858 = vpack.c.b16 %v849, %v848
  %v859 = vpack.c.b16 %v851, %v850
  %868 = vmatprep.subr.bf16.mxu0 0
  %869 = vmatpush1.bf16.msra.mxu0 %v859
  %870 = vmatprep.subr.bf16.mxu0 0
  %871 = vmatpush1.bf16.msra.mxu0 %v858
  %872 = vmatprep.subr.bf16.mxu0 0
  %873 = vmatpush1.bf16.msra.mxu0 %v857
  %874 = vmatprep.subr.bf16.mxu0 0
  %875 = vmatpush1.bf16.msra.mxu0 %v856
  %876 = vmatprep.subr.bf16.mxu0 0
  %877 = vmatpush1.bf16.msra.mxu0 %v855
  %878 = vmatprep.subr.bf16.mxu0 0
  %879 = vmatpush1.bf16.msra.mxu0 %v854
  %880 = vmatprep.subr.bf16.mxu0 0
  %881 = vmatpush1.bf16.msra.mxu0 %v853
  %882 = vmatprep.subr.bf16.mxu0 0
  %883 = vmatpush1.bf16.msra.mxu0 %v852
  %884 = vmatprep.subr.bf16.mxu0 0
  %885 = vmatpush2.bf16.msra.mxu0 0
  %886 = vmatprep.subr.bf16.mxu0 0
  %887 = vmatpush2.bf16.msra.mxu0 0
  %888 = vmatprep.subr.bf16.mxu0 0
  %889 = vmatpush2.bf16.msra.mxu0 0
  %890 = vmatprep.subr.bf16.mxu0 0
  %891 = vmatpush2.bf16.msra.mxu0 0
  %892 = vmatprep.subr.bf16.mxu0 0
  %893 = vmatpush2.bf16.msra.mxu0 0
  %894 = vmatprep.subr.bf16.mxu0 0
  %895 = vmatpush2.bf16.msra.mxu0 0
  %896 = vmatprep.subr.bf16.mxu0 0
  %897 = vmatpush2.bf16.msra.mxu0 0
  %898 = vmatprep.subr.bf16.mxu0 0
  %899 = vmatpush2.bf16.msra.mxu0 0
  %900 = vmatprep.mubr.bf16.mxu0 0
  %901 = vmatmul.mubr.bf16.gmra.mxu0 %v684
  %v902 = vpop.f32.mrf.mxu0
  %v903 = vadd.f32 %v806, %v902
  %v904 = vpop.f32.mrf.mxu0
  %v905 = vpop.f32.mrf.mxu0
  %v906 = vadd.f32 %v809, %v905
  %v907 = vpop.f32.mrf.mxu0
  %908 = vmatprep.mubr.bf16.mxu0 0
  %909 = vmatmul.mubr.bf16.gmra.mxu0 %v685
  %v910 = vpop.f32.mrf.mxu0
  %v911 = vadd.f32 %v814, %v910
  %v912 = vpop.f32.mrf.mxu0
  %v913 = vpop.f32.mrf.mxu0
  %v914 = vadd.f32 %v817, %v913
  %v915 = vpop.f32.mrf.mxu0
  %916 = vdwg.mxu0
  %s917 = scalar_lea.vmem %s2, 128
  %v918 = vld [vmem:[%s917] sm:$0xf]
  %v919 = vld [vmem:[%s917 + $0x4] sm:$0xf]
  %v920 = vld [vmem:[%s917 + $0x8] sm:$0xf]
  %v921 = vld [vmem:[%s917 + $0xc] sm:$0xf]
  %v922 = vld [vmem:[%s917 + $0x10] sm:$0xf]
  %v923 = vld [vmem:[%s917 + $0x14] sm:$0xf]
  %v924 = vld [vmem:[%s917 + $0x18] sm:$0xf]
  %v925 = vld [vmem:[%s917 + $0x1c] sm:$0xf]
  %v926 = vld [vmem:[%s917 + $0x20] sm:$0xf]
  %v927 = vld [vmem:[%s917 + $0x24] sm:$0xf]
  %v928 = vld [vmem:[%s917 + $0x28] sm:$0xf]
  %v929 = vld [vmem:[%s917 + $0x2c] sm:$0xf]
  %v930 = vld [vmem:[%s917 + $0x30] sm:$0xf]
  %v931 = vld [vmem:[%s917 + $0x34] sm:$0xf]
  %v932 = vld [vmem:[%s917 + $0x38] sm:$0xf]
  %v933 = vld [vmem:[%s917 + $0x3c] sm:$0xf]
  %v950 = vunpack.c.l.b16 %v918
  %v951 = vunpack.c.l.b16 %v919
  %v952 = vunpack.c.l.b16 %v920
  %v953 = vunpack.c.l.b16 %v921
  %v954 = vunpack.c.l.b16 %v922
  %v955 = vunpack.c.l.b16 %v923
  %v956 = vunpack.c.l.b16 %v924
  %v957 = vunpack.c.l.b16 %v925
  %v958 = vunpack.c.l.b16 %v926
  %v959 = vunpack.c.l.b16 %v927
  %v960 = vunpack.c.l.b16 %v928
  %v961 = vunpack.c.l.b16 %v929
  %v962 = vunpack.c.l.b16 %v930
  %v963 = vunpack.c.l.b16 %v931
  %v964 = vunpack.c.l.b16 %v932
  %v965 = vunpack.c.l.b16 %v933
  %v966 = vpack.c.b16 %v951, %v950
  %v967 = vpack.c.b16 %v953, %v952
  %v968 = vpack.c.b16 %v955, %v954
  %v969 = vpack.c.b16 %v957, %v956
  %v970 = vpack.c.b16 %v959, %v958
  %v971 = vpack.c.b16 %v961, %v960
  %v972 = vpack.c.b16 %v963, %v962
  %v973 = vpack.c.b16 %v965, %v964
  %982 = vmatprep.subr.bf16.mxu0 0
  %983 = vmatpush1.bf16.msra.mxu0 %v973
  %984 = vmatprep.subr.bf16.mxu0 0
  %985 = vmatpush1.bf16.msra.mxu0 %v972
  %986 = vmatprep.subr.bf16.mxu0 0
  %987 = vmatpush1.bf16.msra.mxu0 %v971
  %988 = vmatprep.subr.bf16.mxu0 0
  %989 = vmatpush1.bf16.msra.mxu0 %v970
  %990 = vmatprep.subr.bf16.mxu0 0
  %991 = vmatpush1.bf16.msra.mxu0 %v969
  %992 = vmatprep.subr.bf16.mxu0 0
  %993 = vmatpush1.bf16.msra.mxu0 %v968
  %994 = vmatprep.subr.bf16.mxu0 0
  %995 = vmatpush1.bf16.msra.mxu0 %v967
  %996 = vmatprep.subr.bf16.mxu0 0
  %997 = vmatpush1.bf16.msra.mxu0 %v966
  %998 = vmatprep.subr.bf16.mxu0 0
  %999 = vmatpush2.bf16.msra.mxu0 0
  %1000 = vmatprep.subr.bf16.mxu0 0
  %1001 = vmatpush2.bf16.msra.mxu0 0
  %1002 = vmatprep.subr.bf16.mxu0 0
  %1003 = vmatpush2.bf16.msra.mxu0 0
  %1004 = vmatprep.subr.bf16.mxu0 0
  %1005 = vmatpush2.bf16.msra.mxu0 0
  %1006 = vmatprep.subr.bf16.mxu0 0
  %1007 = vmatpush2.bf16.msra.mxu0 0
  %1008 = vmatprep.subr.bf16.mxu0 0
  %1009 = vmatpush2.bf16.msra.mxu0 0
  %1010 = vmatprep.subr.bf16.mxu0 0
  %1011 = vmatpush2.bf16.msra.mxu0 0
  %1012 = vmatprep.subr.bf16.mxu0 0
  %1013 = vmatpush2.bf16.msra.mxu0 0
  %1014 = vmatprep.mubr.bf16.mxu0 0
  %1015 = vmatmul.mubr.bf16.gmra.mxu0 %v688
  %v1016 = vpop.f32.mrf.mxu0
  %v1017 = vadd.f32 0.0, %v1016
  %v1018 = vpop.f32.mrf.mxu0
  %v1019 = vpop.f32.mrf.mxu0
  %v1020 = vadd.f32 0.0, %v1019
  %v1021 = vpop.f32.mrf.mxu0
  %1022 = vmatprep.mubr.bf16.mxu0 0
  %1023 = vmatmul.mubr.bf16.gmra.mxu0 %v689
  %v1024 = vpop.f32.mrf.mxu0
  %v1025 = vadd.f32 0.0, %v1024
  %v1026 = vpop.f32.mrf.mxu0
  %v1027 = vpop.f32.mrf.mxu0
  %v1028 = vadd.f32 0.0, %v1027
  %v1029 = vpop.f32.mrf.mxu0
  %1030 = vdwg.mxu0
  %v1031 = vadd.f32 %v903, %v1017
  %v1032 = vadd.f32 %v906, %v1020
  %v1033 = vadd.f32 %v911, %v1025
  %v1034 = vadd.f32 %v914, %v1028
  %v1035 = vadd.f32 %v1031, %v1032
  %v1036 = vadd.f32 %v1035, %v1033
  %v1037 = vadd.f32 %v1036, %v1034
  %v1038 = vrot.slane %v1037, 4
  %v1039 = vadd.f32 %v1037, %v1038
  %v1040 = vrot.slane %v1039, 2
  %v1041 = vadd.f32 %v1039, %v1040
  %v1042 = vrot.slane %v1041, 1
  %v1043 = vadd.f32 %v1041, %v1042
  %v1044 = vmul.f32 %v1031, %v1031
  %v1045 = vmul.f32 %v1032, %v1032
  %v1046 = vmul.f32 %v1033, %v1033
  %v1047 = vmul.f32 %v1034, %v1034
  %v1048 = vadd.f32 %v1044, %v1045
  %v1049 = vadd.f32 %v1048, %v1046
  %v1050 = vadd.f32 %v1049, %v1047
  %v1051 = vrot.slane %v1050, 4
  %v1052 = vadd.f32 %v1050, %v1051
  %v1053 = vrot.slane %v1052, 2
  %v1054 = vadd.f32 %v1052, %v1053
  %v1055 = vrot.slane %v1054, 1
  %v1056 = vadd.f32 %v1054, %v1055
  %v1057 = vsel %vm111, %v1043, %v1056
  %v1058 = vld [vmem:[%s5] sm:$0x1]
  %v1059 = vld [vmem:[%s6] sm:$0x1]
  %1060 = vmatprep.subr.mxu0 0.0
  %1061 = vmatpush1.msra.mxu0 %v49
  %1062 = vmatprep.subr.mxu0 0.0
  %1063 = vmatpush1.msra.mxu0 %v48
  %1064 = vmatprep.subr.mxu0 0.0
  %1065 = vmatpush1.msra.mxu0 %v47
  %1066 = vmatprep.subr.mxu0 0.0
  %1067 = vmatpush1.msra.mxu0 %v46
  %1068 = vmatprep.subr.mxu0 0.0
  %1069 = vmatpush1.msra.mxu0 %v45
  %1070 = vmatprep.subr.mxu0 0.0
  %1071 = vmatpush1.msra.mxu0 %v44
  %1072 = vmatprep.subr.mxu0 0.0
  %1073 = vmatpush1.msra.mxu0 %v43
  %1074 = vmatprep.subr.mxu0 0.0
  %1075 = vmatpush1.msra.mxu0 %v42
  %1076 = vmatprep.subr.mxu0 0.0
  %1077 = vmatpush1.msra.mxu0 %v41
  %1078 = vmatprep.subr.mxu0 0.0
  %1079 = vmatpush1.msra.mxu0 %v40
  %1080 = vmatprep.subr.mxu0 0.0
  %1081 = vmatpush1.msra.mxu0 %v39
  %1082 = vmatprep.subr.mxu0 0.0
  %1083 = vmatpush1.msra.mxu0 %v38
  %1084 = vmatprep.subr.mxu0 0.0
  %1085 = vmatpush1.msra.mxu0 %v37
  %1086 = vmatprep.subr.mxu0 0.0
  %1087 = vmatpush1.msra.mxu0 %v36
  %1088 = vmatprep.subr.mxu0 0.0
  %1089 = vmatpush1.msra.mxu0 %v35
  %1090 = vmatprep.subr.mxu0 0.0
  %1091 = vmatpush1.msra.mxu0 %v34
  %1092 = vmatprep.subr.mxu0 0.0
  %1093 = vmatpush2.msra.mxu0 0.0
  %1094 = vmatprep.subr.mxu0 0.0
  %1095 = vmatpush2.msra.mxu0 0.0
  %1096 = vmatprep.subr.mxu0 0.0
  %1097 = vmatpush2.msra.mxu0 0.0
  %1098 = vmatprep.subr.mxu0 0.0
  %1099 = vmatpush2.msra.mxu0 0.0
  %1100 = vmatprep.subr.mxu0 0.0
  %1101 = vmatpush2.msra.mxu0 0.0
  %1102 = vmatprep.subr.mxu0 0.0
  %1103 = vmatpush2.msra.mxu0 0.0
  %1104 = vmatprep.subr.mxu0 0.0
  %1105 = vmatpush2.msra.mxu0 0.0
  %1106 = vmatprep.subr.mxu0 0.0
  %1107 = vmatpush2.msra.mxu0 0.0
  %1108 = vmatprep.subr.mxu0 0.0
  %1109 = vmatpush2.msra.mxu0 0.0
  %1110 = vmatprep.subr.mxu0 0.0
  %1111 = vmatpush2.msra.mxu0 0.0
  %1112 = vmatprep.subr.mxu0 0.0
  %1113 = vmatpush2.msra.mxu0 0.0
  %1114 = vmatprep.subr.mxu0 0.0
  %1115 = vmatpush2.msra.mxu0 0.0
  %1116 = vmatprep.subr.mxu0 0.0
  %1117 = vmatpush2.msra.mxu0 0.0
  %1118 = vmatprep.subr.mxu0 0.0
  %1119 = vmatpush2.msra.mxu0 0.0
  %1120 = vmatprep.subr.mxu0 0.0
  %1121 = vmatpush2.msra.mxu0 0.0
  %1122 = vmatprep.subr.mxu0 0.0
  %1123 = vmatpush2.msra.mxu0 0.0
  %1124 = vmatprep.mubr.f32.mxu0 0.0
  %1125 = vmatmul.mubr.f32.gmra.mxu0 %v1057
  %v1126 = vpop.f32.mrf.mxu0
  %v1127 = vadd.f32 0.0, %v1126
  %v1128 = vpop.f32.mrf.mxu0
  %1129 = vdwg.mxu0
  %v1130 = vmul.f32 %v1127, 0.001953125
  %v1131 = vmul.f32 %v1130, %v1130
  %v1133 = vrot.slane %v1131, 7
  %v1135 = vsub.f32 %v1130, %v1133
  %v1136 = vmax.f32 %v1135, 0.0
  %v1137 = vadd.f32 %v1136, 1e-05
  %v1138 = vrsqrt.pop %v1137
  %v1141 = vunpack.c.l.s4 1966171168
  %v1142 = vunpack.c.0.s8 %v1141
  %v1143 = vlaneseq
  %v1144 = vshrl.u32 %v1143, 7
  %v1145 = vsub.s32 %v1142, %v1144
  %v1146 = vrot.slane %v1138, %v1145
  %v1147 = vcombine.high %v1146, %v1146
  %v1149 = vunpack.c.l.s4 1966171168
  %v1150 = vunpack.c.0.s8 %v1149
  %v1151 = vlaneseq
  %v1152 = vshrl.u32 %v1151, 7
  %v1153 = vsub.s32 %v1150, %v1152
  %v1154 = vrot.slane %v1147, %v1153
  %v1156 = vmul.f32 %v1058, %v1154
  %v1157 = vmul.f32 %v1130, %v1156
  %v1158 = vsub.f32 %v1059, %v1157
  %v1160 = vlaneseq
  %v1161 = vshrl.u32 %v1160, 7
  %v1162 = vsub.s32 0, %v1161
  %v1163 = vrot.slane %v1156, %v1162
  %v1165 = vmul.f32 %v1031, %v1163
  %v1166 = vmul.f32 %v1032, %v1163
  %v1167 = vmul.f32 %v1033, %v1163
  %v1168 = vmul.f32 %v1034, %v1163
  %v1170 = vlaneseq
  %v1171 = vshrl.u32 %v1170, 7
  %v1172 = vsub.s32 0, %v1171
  %v1173 = vrot.slane %v1158, %v1172
  %v1175 = vadd.f32 %v1165, %v1173
  %v1176 = vadd.f32 %v1166, %v1173
  %v1177 = vadd.f32 %v1167, %v1173
  %v1178 = vadd.f32 %v1168, %v1173
  %v1179 = vmax.f32 %v1175, 0.0
  %v1180 = vmax.f32 %v1176, 0.0
  %v1181 = vmax.f32 %v1177, 0.0
  %v1182 = vmax.f32 %v1178, 0.0
  %v1183 = vadd.f32 %v30, %v1179
  %v1184 = vadd.f32 %v31, %v1180
  %v1185 = vadd.f32 %v32, %v1181
  %v1186 = vadd.f32 %v33, %v1182
  %v1187 = vmax.f32 %v1183, 0.0
  %v1188 = vmax.f32 %v1184, 0.0
  %v1189 = vmax.f32 %v1185, 0.0
  %v1190 = vmax.f32 %v1186, 0.0
  %1191 = vst [vmem:[%s8] sm:$0xff] %v1187
  %1192 = vst [vmem:[%s8 + $0x8] sm:$0xff] %v1188
  %1193 = vst [vmem:[%s8 + $0x10] sm:$0xff] %v1189
  %1194 = vst [vmem:[%s8 + $0x18] sm:$0xff] %v1190
  // Predicated region
  $region34: #{residual_block_forward.1} parent=0 // pred_check
    _
  $region35: #{residual_block_forward.1} parent=0 // pred_check_branch
    %1196 = sbr.rel (0) target = $region37
  $region36: #{residual_block_forward.1} parent=0 // pred_region
    _
  $region37: #{residual_block_forward.1} parent=0 // pred_fallthru
    _
  // Predicated region
  $region38: #{residual_block_forward.1} parent=0 // pred_check
    _
  $region39: #{residual_block_forward.1} parent=0 // pred_check_branch
    %1198 = sbr.rel (0) target = $region41
  $region40: #{residual_block_forward.1} parent=0 // pred_region
    _
  $region41: #{residual_block_forward.1} parent=0 // pred_fallthru
    _

</llo_original>
